<compile_context>
chip_gen: v5e
topology: v5e:2x2
jax: 0.10.0
libtpu: 0.0.40
codegen_flags: <defaults>
</compile_context>

<pallas_src>
import jax
import jax.numpy as jnp
from jax.experimental import pallas as pl
from jax.experimental.pallas import tpu as pltpu

# ----------------------------- model hyper-parameters ------------------------
NF = [3, 8, 8, 16, 16, 32]          # hparams.nf
LATENT = 8                          # hparams.latent_dim
BATCH = 2                           # hparams.batch_size
NODES = [16, 8, 4, 4, 2]            # per-sample node count at graph levels bg..bg4
KS = 5                              # spline kernel_size per pseudo-coordinate dim
KDIM = 3                            # dim=3
K = KS ** KDIM                      # 125 spline weight matrices per SplineConv

ROWS = 8                            # sublane-padded batch rows (BATCH=2 -> pad to 8)
LANES = 128                         # lane-padded feature width (max node*channel = 128)
NLAYERS = 15                        # 10 folded convs + 5 linear layers
NLAYERS_PAD = 16


# --------------------------------- fused kernel ------------------------------
def _graph_vae_kernel(x_ref, eps_ref, w_ref, b_ref, mu_ref, lv_ref, rec_ref):
    """Whole GraphVAE forward. x/eps/mu/lv/rec: (8,128) f32; w: (16,128,128) bf16;
    b: (16,8,128) f32.  Layer order in the slabs:
      0..4  : conv1 .. conv5      (preceding pool P01/P12/P23/P34 folded into 1..4)
      5     : fce1                (Pn1 folded in)
      6,7   : fce21, fce22
      8,9   : fcd3, fcd4
      10..14: deconv5 .. deconv1  (preceding pool P1n/P43/P32/P21/P10 folded in)
    """

    def elu(y):
        # clamp so the discarded branch of the select never produces inf; elu(0)=0
        return jnp.where(y > 0.0, y, jnp.exp(jnp.minimum(y, 0.0)) - 1.0)

    def layer(x, li, act=True):
        # bf16 x bf16 operands, f32 accumulation (explicit precision policy)
        y = jnp.dot(x.astype(jnp.bfloat16), w_ref[li],
                    preferred_element_type=jnp.float32)
        y = y + b_ref[li]                      # bias rows >= BATCH are zero
        return elu(y) if act else y

    # --------------------------------- encoder --------------------------------
    x = x_ref[...]                             # (8,128) packed node*channel lanes
    for li in range(5):                        # conv1..conv5 (+ folded pooling)
        x = layer(x, li)
    x = layer(x, 5)                            # fce1 (Pn1 folded)
    mu = layer(x, 6, act=False)                # fce21
    lv = layer(x, 7, act=False)                # fce22
    mu_ref[...] = mu
    lv_ref[...] = lv

    # ----------------------------- reparameterize -----------------------------
    z = eps_ref[...] * jnp.exp(0.5 * lv) + mu  # padded lanes: 0*1+0 = 0

    # --------------------------------- decoder --------------------------------
    x = layer(z, 8)                            # fcd3
    x = layer(x, 9)                            # fcd4
    for li in range(10, 15):                   # deconv5..deconv1 (+ folded pooling)
        x = layer(x, li)
    rec_ref[...] = x


# --------------------------------- forward -----------------------------------
def graph_vae_forward(consts, x, eps):
    w_slab, b_slab = consts['W'], consts['B']

    # pack the runtime inputs into the (8,128) batch-rows x packed-lanes layout
    x0 = jnp.zeros((ROWS, LANES), jnp.float32).at[:BATCH, :NODES[0] * NF[0]].set(
        x.astype(jnp.float32).reshape(BATCH, NODES[0] * NF[0]))
    ep = jnp.zeros((ROWS, LANES), jnp.float32).at[:BATCH, :LATENT].set(
        eps.astype(jnp.float32))

    def spec(shape):
        nd = len(shape)
        return pl.BlockSpec(tuple(shape), lambda i, _nd=nd: (0,) * _nd)

    mu_p, lv_p, rec_p = pl.pallas_call(
        _graph_vae_kernel,
        grid=(1,),                                           # single grid step
        in_specs=[spec(x0.shape), spec(ep.shape),
                  spec(w_slab.shape), spec(b_slab.shape)],
        out_specs=(spec((ROWS, LANES)), spec((ROWS, LANES)), spec((ROWS, LANES))),
        out_shape=(jax.ShapeDtypeStruct((ROWS, LANES), jnp.float32),
                   jax.ShapeDtypeStruct((ROWS, LANES), jnp.float32),
                   jax.ShapeDtypeStruct((ROWS, LANES), jnp.float32)),
        compiler_params=pltpu.CompilerParams(dimension_semantics=("arbitrary",)),
    )(x0, ep, w_slab, b_slab)

    mu = mu_p[:BATCH, :LATENT]
    logvar = lv_p[:BATCH, :LATENT]
    recon = rec_p[:BATCH, :NODES[0] * NF[0]]
    return recon, mu, logvar


# ---------------------- graph-/weight-static pre-folding ----------------------
def _spline_basis(edge_attr):
    """Degree-1 open B-spline basis over pseudo-coords in [0,1]^3 -> (E, 125)."""
    u = jnp.clip(edge_attr, 0.0, 1.0) * (KS - 1)
    lo = jnp.clip(jnp.floor(u), 0, KS - 2).astype(jnp.int32)
    frac = u - lo.astype(u.dtype)
    oh_lo = jax.nn.one_hot(lo, KS, dtype=jnp.float32)
    oh_hi = jax.nn.one_hot(lo + 1, KS, dtype=jnp.float32)
    bd = oh_lo * (1.0 - frac)[..., None] + oh_hi * frac[..., None]   # (E, 3, KS)
    basis = jnp.einsum('ea,eb,ec->eabc', bd[:, 0, :], bd[:, 1, :], bd[:, 2, :])
    return basis.reshape(edge_attr.shape[0], K)


def _fold_spline(p, graph, n, cin, cout, pool=None):
    """Fold one SplineConv (gather + basis⊗W + root + scatter-sum) and the pooling
    matrix that precedes it into a dense (n_in*cin, n*cout) operator + bias row."""
    basis = _spline_basis(graph['edge_attr'])                      # (E, K)
    T = jnp.einsum('ek,kio->eio', basis, p['w'])                   # (E, cin, cout)
    A = jnp.zeros((n, n, cin, cout), jnp.float32)                  # [src, dst, i, o]
    A = A.at[graph['src'], graph['dst']].add(T)                    # sum aggregation
    idx = jnp.arange(n)
    A = A.at[idx, idx].add(jnp.broadcast_to(p['w_root'], (n, cin, cout)))  # root
    A = A.transpose(0, 2, 1, 3)                                    # [u, i, j, o]
    if pool is not None:                                           # pool: (n, n_prev)
        A = jnp.einsum('uv,uijo->vijo', pool, A)                   # fold preceding pool
        n_in = pool.shape[1]
    else:
        n_in = n
    Wf = A.reshape(n_in * cin, n * cout)
    brow = jnp.tile(p['b'], (n,))                                  # bias per node*channel
    return Wf, brow


def prepare_constants(params, graphs, pools):
    """Fold graph + pooling + weights into two kernel-ready slabs (runs once)."""
    Wfs, brows = [], []

    # encoder convs (pool that feeds each conv is folded into it)
    enc = [('conv1', 0, NF[0], NF[1], None),
           ('conv2', 1, NF[1], NF[2], pools['P01']),
           ('conv3', 2, NF[2], NF[3], pools['P12']),
           ('conv4', 3, NF[3], NF[4], pools['P23']),
           ('conv5', 4, NF[4], NF[5], pools['P34'])]
    for name, l, cin, cout, P in enc:
        Wf, brow = _fold_spline(params[name], graphs[l], NODES[l], cin, cout, P)
        Wfs.append(Wf); brows.append(brow)

    # fce1 with Pn1 folded:  Wf[(u,i), o] = Pn1[0,u] * W_fce1[i,o]
    Wf = jnp.einsum('u,io->uio', pools['Pn1'][0], params['fce1']['w']).reshape(
        NODES[4] * NF[5], NF[5])
    Wfs.append(Wf); brows.append(params['fce1']['b'])
    Wfs.append(params['fce21']['w']); brows.append(params['fce21']['b'])
    Wfs.append(params['fce22']['w']); brows.append(params['fce22']['b'])
    Wfs.append(params['fcd3']['w']);  brows.append(params['fcd3']['b'])
    Wfs.append(params['fcd4']['w']);  brows.append(params['fcd4']['b'])

    # decoder convs (upsampling pool that feeds each deconv is folded into it)
    dec = [('deconv5', 4, NF[5], NF[4], pools['P1n']),
           ('deconv4', 3, NF[4], NF[3], pools['P43']),
           ('deconv3', 2, NF[3], NF[2], pools['P32']),
           ('deconv2', 1, NF[2], NF[1], pools['P21']),
           ('deconv1', 0, NF[1], NF[0], pools['P10'])]
    for name, l, cin, cout, P in dec:
        Wf, brow = _fold_spline(params[name], graphs[l], NODES[l], cin, cout, P)
        Wfs.append(Wf); brows.append(brow)

    assert len(Wfs) == NLAYERS
    w_slab = jnp.zeros((NLAYERS_PAD, LANES, LANES), jnp.float32)
    b_slab = jnp.zeros((NLAYERS_PAD, ROWS, LANES), jnp.float32)
    for li, (Wf, brow) in enumerate(zip(Wfs, brows)):
        w_slab = w_slab.at[li, :Wf.shape[0], :Wf.shape[1]].set(Wf)
        # bias rows >= BATCH stay zero -> padded rows remain exactly 0 everywhere
        b_slab = b_slab.at[li, :BATCH, :brow.shape[0]].set(
            jnp.broadcast_to(brow, (BATCH, brow.shape[0])))
    return {'W': w_slab.astype(jnp.bfloat16), 'B': b_slab}


# -------------------------- deterministic initialization ----------------------
def init_params(key):
    params = {}

    def nxt():
        nonlocal key
        key, sub = jax.random.split(key)
        return sub

    def spline_p(cin, cout):
        return {'w': 0.1 * jax.random.normal(nxt(), (K, cin, cout), jnp.float32),
                'w_root': 0.1 * jax.random.normal(nxt(), (cin, cout), jnp.float32),
                'b': 0.01 * jax.random.normal(nxt(), (cout,), jnp.float32)}

    def linear_p(cin, cout):
        return {'w': 0.1 * jax.random.normal(nxt(), (cin, cout), jnp.float32),
                'b': 0.01 * jax.random.normal(nxt(), (cout,), jnp.float32)}

    for i in range(5):
        params[f'conv{i + 1}'] = spline_p(NF[i], NF[i + 1])      # encoder conv_i
        params[f'deconv{i + 1}'] = spline_p(NF[i + 1], NF[i])    # decoder deconv_i
    params['fce1'] = linear_p(NF[5], NF[5])
    params['fce21'] = linear_p(NF[5], LATENT)
    params['fce22'] = linear_p(NF[5], LATENT)
    params['fcd3'] = linear_p(LATENT, NF[5])
    params['fcd4'] = linear_p(NF[5], NF[5])
    return params, key


def build_graphs(key):
    """Synthetic ring graphs for one mesh (bg..bg4, shared across the batch, as in
    set_graphs) + pooling matrices."""
    graphs = []
    for n in NODES:
        src, dst = [], []
        for i in range(n):
            j = (i + 1) % n
            src += [i, j]
            dst += [j, i]
        key, sub = jax.random.split(key)
        graphs.append({'src': jnp.array(src, jnp.int32),
                       'dst': jnp.array(dst, jnp.int32),
                       'edge_attr': jax.random.uniform(sub, (len(src), KDIM),
                                                       jnp.float32)})

    def pm(nout, nin):
        nonlocal key
        key, sub = jax.random.split(key)
        return jax.random.uniform(sub, (nout, nin), jnp.float32) / nin

    pools = {'P01': pm(NODES[1], NODES[0]), 'P12': pm(NODES[2], NODES[1]),
             'P23': pm(NODES[3], NODES[2]), 'P34': pm(NODES[4], NODES[3]),
             'Pn1': pm(1, NODES[4]), 'P1n': pm(NODES[4], 1),
             'P43': pm(NODES[3], NODES[4]), 'P32': pm(NODES[2], NODES[3]),
             'P21': pm(NODES[1], NODES[2]), 'P10': pm(NODES[0], NODES[1])}
    return graphs, pools, key


# ------------------------------------ main ------------------------------------
if __name__ == "__main__":
    key = jax.random.PRNGKey(0)
    params, key = init_params(key)
    graphs, pools, key = build_graphs(key)
    consts = prepare_constants(params, graphs, pools)   # graph + weight folding, once
    key, kx, keps = jax.random.split(key, 3)

    # data.x : node features at graph level 0 (batched graph: BATCH*NODES[0] nodes)
    x = jax.random.normal(kx, (BATCH * NODES[0], NF[0]), jnp.float32)
    # eps plays the role of torch.randn_like(std) in reparameterize (deterministic)
    eps = jax.random.normal(keps, (BATCH, LATENT), jnp.float32)

    fwd = jax.jit(graph_vae_forward)
    recon, mu, logvar = fwd(consts, x, eps)
    jax.block_until_ready((recon, mu, logvar))

    assert recon.shape == (BATCH, NODES[0] * NF[0])
    assert mu.shape == (BATCH, LATENT)
    assert logvar.shape == (BATCH, LATENT)
    assert bool(jnp.all(jnp.isfinite(recon)))
    assert bool(jnp.all(jnp.isfinite(mu))) and bool(jnp.all(jnp.isfinite(logvar)))
    print("KERNEL_OK")
</pallas_src>

<mosaic_0001>
module attributes {stable_mosaic.version = 11 : i64} {
  func.func @_graph_vae_kernel(%arg0: i32, %arg1: memref<8x128xf32, #tpu.memory_space<vmem>>, %arg2: memref<8x128xf32, #tpu.memory_space<vmem>>, %arg3: memref<16x128x128xbf16, #tpu.memory_space<vmem>>, %arg4: memref<16x8x128xf32, #tpu.memory_space<vmem>>, %arg5: memref<8x128xf32, #tpu.memory_space<vmem>>, %arg6: memref<8x128xf32, #tpu.memory_space<vmem>>, %arg7: memref<8x128xf32, #tpu.memory_space<vmem>>) attributes {dimension_semantics = [#tpu.dimension_semantics<arbitrary>], iteration_bounds = array<i64: 1>, scalar_prefetch = 0 : i64, scratch_operands = 0 : i64, tpu.core_type = #tpu.core_type<tc>, window_params = [{pipeline_mode = #tpu.pipeline_mode<synchronous>, transform_indices = @transform_0, window_bounds = array<i64: 8, 128>}, {pipeline_mode = #tpu.pipeline_mode<synchronous>, transform_indices = @transform_1, window_bounds = array<i64: 8, 128>}, {pipeline_mode = #tpu.pipeline_mode<synchronous>, transform_indices = @transform_2, window_bounds = array<i64: 16, 128, 128>}, {pipeline_mode = #tpu.pipeline_mode<synchronous>, transform_indices = @transform_3, window_bounds = array<i64: 16, 8, 128>}, {pipeline_mode = #tpu.pipeline_mode<synchronous>, transform_indices = @transform_4, window_bounds = array<i64: 8, 128>}, {pipeline_mode = #tpu.pipeline_mode<synchronous>, transform_indices = @transform_5, window_bounds = array<i64: 8, 128>}, {pipeline_mode = #tpu.pipeline_mode<synchronous>, transform_indices = @transform_6, window_bounds = array<i64: 8, 128>}]} {
    %c0 = arith.constant 0 : index
    %c0_0 = arith.constant 0 : index
    %0 = vector.load %arg1[%c0, %c0_0] : memref<8x128xf32, #tpu.memory_space<vmem>>, vector<8x128xf32>
    %1 = arith.truncf %0 : vector<8x128xf32> to vector<8x128xbf16>
    %c0_1 = arith.constant 0 : index
    %c0_2 = arith.constant 0 : index
    %c0_3 = arith.constant 0 : index
    %2 = vector.load %arg3[%c0_1, %c0_2, %c0_3] : memref<16x128x128xbf16, #tpu.memory_space<vmem>>, vector<1x128x128xbf16>
    %3 = vector.shape_cast %2 : vector<1x128x128xbf16> to vector<128x128xbf16>
    %cst = arith.constant dense<0.000000e+00> : vector<8x128xf32>
    %4 = tpu.matmul %1, %3, %cst {dimension_numbers = #tpu.dot_dimension_numbers<[1], [0], [0], [1], [0, 0, 1, 1], [], []>} : vector<8x128xbf16>, vector<128x128xbf16>, vector<8x128xf32> -> vector<8x128xf32>
    %c0_4 = arith.constant 0 : index
    %c0_5 = arith.constant 0 : index
    %c0_6 = arith.constant 0 : index
    %5 = vector.load %arg4[%c0_4, %c0_5, %c0_6] : memref<16x8x128xf32, #tpu.memory_space<vmem>>, vector<1x8x128xf32>
    %6 = vector.shape_cast %5 : vector<1x8x128xf32> to vector<8x128xf32>
    %7 = arith.addf %4, %6 : vector<8x128xf32>
    %cst_7 = arith.constant 0.000000e+00 : f32
    %8 = vector.broadcast %cst_7 : f32 to vector<8x128xf32>
    %9 = arith.cmpf ogt, %7, %8 : vector<8x128xf32>
    %cst_8 = arith.constant 0.000000e+00 : f32
    %10 = vector.broadcast %cst_8 : f32 to vector<8x128xf32>
    %11 = arith.minimumf %7, %10 : vector<8x128xf32>
    %12 = math.exp %11 : vector<8x128xf32>
    %cst_9 = arith.constant 1.000000e+00 : f32
    %13 = vector.broadcast %cst_9 : f32 to vector<8x128xf32>
    %14 = arith.subf %12, %13 : vector<8x128xf32>
    %15 = arith.select %9, %7, %14 : vector<8x128xi1>, vector<8x128xf32>
    %16 = arith.truncf %15 : vector<8x128xf32> to vector<8x128xbf16>
    %c1 = arith.constant 1 : index
    %c0_10 = arith.constant 0 : index
    %c0_11 = arith.constant 0 : index
    %17 = vector.load %arg3[%c1, %c0_10, %c0_11] : memref<16x128x128xbf16, #tpu.memory_space<vmem>>, vector<1x128x128xbf16>
    %18 = vector.shape_cast %17 : vector<1x128x128xbf16> to vector<128x128xbf16>
    %cst_12 = arith.constant dense<0.000000e+00> : vector<8x128xf32>
    %19 = tpu.matmul %16, %18, %cst_12 {dimension_numbers = #tpu.dot_dimension_numbers<[1], [0], [0], [1], [0, 0, 1, 1], [], []>} : vector<8x128xbf16>, vector<128x128xbf16>, vector<8x128xf32> -> vector<8x128xf32>
    %c1_13 = arith.constant 1 : index
    %c0_14 = arith.constant 0 : index
    %c0_15 = arith.constant 0 : index
    %20 = vector.load %arg4[%c1_13, %c0_14, %c0_15] : memref<16x8x128xf32, #tpu.memory_space<vmem>>, vector<1x8x128xf32>
    %21 = vector.shape_cast %20 : vector<1x8x128xf32> to vector<8x128xf32>
    %22 = arith.addf %19, %21 : vector<8x128xf32>
    %cst_16 = arith.constant 0.000000e+00 : f32
    %23 = vector.broadcast %cst_16 : f32 to vector<8x128xf32>
    %24 = arith.cmpf ogt, %22, %23 : vector<8x128xf32>
    %cst_17 = arith.constant 0.000000e+00 : f32
    %25 = vector.broadcast %cst_17 : f32 to vector<8x128xf32>
    %26 = arith.minimumf %22, %25 : vector<8x128xf32>
    %27 = math.exp %26 : vector<8x128xf32>
    %cst_18 = arith.constant 1.000000e+00 : f32
    %28 = vector.broadcast %cst_18 : f32 to vector<8x128xf32>
    %29 = arith.subf %27, %28 : vector<8x128xf32>
    %30 = arith.select %24, %22, %29 : vector<8x128xi1>, vector<8x128xf32>
    %31 = arith.truncf %30 : vector<8x128xf32> to vector<8x128xbf16>
    %c2 = arith.constant 2 : index
    %c0_19 = arith.constant 0 : index
    %c0_20 = arith.constant 0 : index
    %32 = vector.load %arg3[%c2, %c0_19, %c0_20] : memref<16x128x128xbf16, #tpu.memory_space<vmem>>, vector<1x128x128xbf16>
    %33 = vector.shape_cast %32 : vector<1x128x128xbf16> to vector<128x128xbf16>
    %cst_21 = arith.constant dense<0.000000e+00> : vector<8x128xf32>
    %34 = tpu.matmul %31, %33, %cst_21 {dimension_numbers = #tpu.dot_dimension_numbers<[1], [0], [0], [1], [0, 0, 1, 1], [], []>} : vector<8x128xbf16>, vector<128x128xbf16>, vector<8x128xf32> -> vector<8x128xf32>
    %c2_22 = arith.constant 2 : index
    %c0_23 = arith.constant 0 : index
    %c0_24 = arith.constant 0 : index
    %35 = vector.load %arg4[%c2_22, %c0_23, %c0_24] : memref<16x8x128xf32, #tpu.memory_space<vmem>>, vector<1x8x128xf32>
    %36 = vector.shape_cast %35 : vector<1x8x128xf32> to vector<8x128xf32>
    %37 = arith.addf %34, %36 : vector<8x128xf32>
    %cst_25 = arith.constant 0.000000e+00 : f32
    %38 = vector.broadcast %cst_25 : f32 to vector<8x128xf32>
    %39 = arith.cmpf ogt, %37, %38 : vector<8x128xf32>
    %cst_26 = arith.constant 0.000000e+00 : f32
    %40 = vector.broadcast %cst_26 : f32 to vector<8x128xf32>
    %41 = arith.minimumf %37, %40 : vector<8x128xf32>
    %42 = math.exp %41 : vector<8x128xf32>
    %cst_27 = arith.constant 1.000000e+00 : f32
    %43 = vector.broadcast %cst_27 : f32 to vector<8x128xf32>
    %44 = arith.subf %42, %43 : vector<8x128xf32>
    %45 = arith.select %39, %37, %44 : vector<8x128xi1>, vector<8x128xf32>
    %46 = arith.truncf %45 : vector<8x128xf32> to vector<8x128xbf16>
    %c3 = arith.constant 3 : index
    %c0_28 = arith.constant 0 : index
    %c0_29 = arith.constant 0 : index
    %47 = vector.load %arg3[%c3, %c0_28, %c0_29] : memref<16x128x128xbf16, #tpu.memory_space<vmem>>, vector<1x128x128xbf16>
    %48 = vector.shape_cast %47 : vector<1x128x128xbf16> to vector<128x128xbf16>
    %cst_30 = arith.constant dense<0.000000e+00> : vector<8x128xf32>
    %49 = tpu.matmul %46, %48, %cst_30 {dimension_numbers = #tpu.dot_dimension_numbers<[1], [0], [0], [1], [0, 0, 1, 1], [], []>} : vector<8x128xbf16>, vector<128x128xbf16>, vector<8x128xf32> -> vector<8x128xf32>
    %c3_31 = arith.constant 3 : index
    %c0_32 = arith.constant 0 : index
    %c0_33 = arith.constant 0 : index
    %50 = vector.load %arg4[%c3_31, %c0_32, %c0_33] : memref<16x8x128xf32, #tpu.memory_space<vmem>>, vector<1x8x128xf32>
    %51 = vector.shape_cast %50 : vector<1x8x128xf32> to vector<8x128xf32>
    %52 = arith.addf %49, %51 : vector<8x128xf32>
    %cst_34 = arith.constant 0.000000e+00 : f32
    %53 = vector.broadcast %cst_34 : f32 to vector<8x128xf32>
    %54 = arith.cmpf ogt, %52, %53 : vector<8x128xf32>
    %cst_35 = arith.constant 0.000000e+00 : f32
    %55 = vector.broadcast %cst_35 : f32 to vector<8x128xf32>
    %56 = arith.minimumf %52, %55 : vector<8x128xf32>
    %57 = math.exp %56 : vector<8x128xf32>
    %cst_36 = arith.constant 1.000000e+00 : f32
    %58 = vector.broadcast %cst_36 : f32 to vector<8x128xf32>
    %59 = arith.subf %57, %58 : vector<8x128xf32>
    %60 = arith.select %54, %52, %59 : vector<8x128xi1>, vector<8x128xf32>
    %61 = arith.truncf %60 : vector<8x128xf32> to vector<8x128xbf16>
    %c4 = arith.constant 4 : index
    %c0_37 = arith.constant 0 : index
    %c0_38 = arith.constant 0 : index
    %62 = vector.load %arg3[%c4, %c0_37, %c0_38] : memref<16x128x128xbf16, #tpu.memory_space<vmem>>, vector<1x128x128xbf16>
    %63 = vector.shape_cast %62 : vector<1x128x128xbf16> to vector<128x128xbf16>
    %cst_39 = arith.constant dense<0.000000e+00> : vector<8x128xf32>
    %64 = tpu.matmul %61, %63, %cst_39 {dimension_numbers = #tpu.dot_dimension_numbers<[1], [0], [0], [1], [0, 0, 1, 1], [], []>} : vector<8x128xbf16>, vector<128x128xbf16>, vector<8x128xf32> -> vector<8x128xf32>
    %c4_40 = arith.constant 4 : index
    %c0_41 = arith.constant 0 : index
    %c0_42 = arith.constant 0 : index
    %65 = vector.load %arg4[%c4_40, %c0_41, %c0_42] : memref<16x8x128xf32, #tpu.memory_space<vmem>>, vector<1x8x128xf32>
    %66 = vector.shape_cast %65 : vector<1x8x128xf32> to vector<8x128xf32>
    %67 = arith.addf %64, %66 : vector<8x128xf32>
    %cst_43 = arith.constant 0.000000e+00 : f32
    %68 = vector.broadcast %cst_43 : f32 to vector<8x128xf32>
    %69 = arith.cmpf ogt, %67, %68 : vector<8x128xf32>
    %cst_44 = arith.constant 0.000000e+00 : f32
    %70 = vector.broadcast %cst_44 : f32 to vector<8x128xf32>
    %71 = arith.minimumf %67, %70 : vector<8x128xf32>
    %72 = math.exp %71 : vector<8x128xf32>
    %cst_45 = arith.constant 1.000000e+00 : f32
    %73 = vector.broadcast %cst_45 : f32 to vector<8x128xf32>
    %74 = arith.subf %72, %73 : vector<8x128xf32>
    %75 = arith.select %69, %67, %74 : vector<8x128xi1>, vector<8x128xf32>
    %76 = arith.truncf %75 : vector<8x128xf32> to vector<8x128xbf16>
    %c5 = arith.constant 5 : index
    %c0_46 = arith.constant 0 : index
    %c0_47 = arith.constant 0 : index
    %77 = vector.load %arg3[%c5, %c0_46, %c0_47] : memref<16x128x128xbf16, #tpu.memory_space<vmem>>, vector<1x128x128xbf16>
    %78 = vector.shape_cast %77 : vector<1x128x128xbf16> to vector<128x128xbf16>
    %cst_48 = arith.constant dense<0.000000e+00> : vector<8x128xf32>
    %79 = tpu.matmul %76, %78, %cst_48 {dimension_numbers = #tpu.dot_dimension_numbers<[1], [0], [0], [1], [0, 0, 1, 1], [], []>} : vector<8x128xbf16>, vector<128x128xbf16>, vector<8x128xf32> -> vector<8x128xf32>
    %c5_49 = arith.constant 5 : index
    %c0_50 = arith.constant 0 : index
    %c0_51 = arith.constant 0 : index
    %80 = vector.load %arg4[%c5_49, %c0_50, %c0_51] : memref<16x8x128xf32, #tpu.memory_space<vmem>>, vector<1x8x128xf32>
    %81 = vector.shape_cast %80 : vector<1x8x128xf32> to vector<8x128xf32>
    %82 = arith.addf %79, %81 : vector<8x128xf32>
    %cst_52 = arith.constant 0.000000e+00 : f32
    %83 = vector.broadcast %cst_52 : f32 to vector<8x128xf32>
    %84 = arith.cmpf ogt, %82, %83 : vector<8x128xf32>
    %cst_53 = arith.constant 0.000000e+00 : f32
    %85 = vector.broadcast %cst_53 : f32 to vector<8x128xf32>
    %86 = arith.minimumf %82, %85 : vector<8x128xf32>
    %87 = math.exp %86 : vector<8x128xf32>
    %cst_54 = arith.constant 1.000000e+00 : f32
    %88 = vector.broadcast %cst_54 : f32 to vector<8x128xf32>
    %89 = arith.subf %87, %88 : vector<8x128xf32>
    %90 = arith.select %84, %82, %89 : vector<8x128xi1>, vector<8x128xf32>
    %91 = arith.truncf %90 : vector<8x128xf32> to vector<8x128xbf16>
    %c6 = arith.constant 6 : index
    %c0_55 = arith.constant 0 : index
    %c0_56 = arith.constant 0 : index
    %92 = vector.load %arg3[%c6, %c0_55, %c0_56] : memref<16x128x128xbf16, #tpu.memory_space<vmem>>, vector<1x128x128xbf16>
    %93 = vector.shape_cast %92 : vector<1x128x128xbf16> to vector<128x128xbf16>
    %cst_57 = arith.constant dense<0.000000e+00> : vector<8x128xf32>
    %94 = tpu.matmul %91, %93, %cst_57 {dimension_numbers = #tpu.dot_dimension_numbers<[1], [0], [0], [1], [0, 0, 1, 1], [], []>} : vector<8x128xbf16>, vector<128x128xbf16>, vector<8x128xf32> -> vector<8x128xf32>
    %c6_58 = arith.constant 6 : index
    %c0_59 = arith.constant 0 : index
    %c0_60 = arith.constant 0 : index
    %95 = vector.load %arg4[%c6_58, %c0_59, %c0_60] : memref<16x8x128xf32, #tpu.memory_space<vmem>>, vector<1x8x128xf32>
    %96 = vector.shape_cast %95 : vector<1x8x128xf32> to vector<8x128xf32>
    %97 = arith.addf %94, %96 : vector<8x128xf32>
    %98 = arith.truncf %90 : vector<8x128xf32> to vector<8x128xbf16>
    %c7 = arith.constant 7 : index
    %c0_61 = arith.constant 0 : index
    %c0_62 = arith.constant 0 : index
    %99 = vector.load %arg3[%c7, %c0_61, %c0_62] : memref<16x128x128xbf16, #tpu.memory_space<vmem>>, vector<1x128x128xbf16>
    %100 = vector.shape_cast %99 : vector<1x128x128xbf16> to vector<128x128xbf16>
    %cst_63 = arith.constant dense<0.000000e+00> : vector<8x128xf32>
    %101 = tpu.matmul %98, %100, %cst_63 {dimension_numbers = #tpu.dot_dimension_numbers<[1], [0], [0], [1], [0, 0, 1, 1], [], []>} : vector<8x128xbf16>, vector<128x128xbf16>, vector<8x128xf32> -> vector<8x128xf32>
    %c7_64 = arith.constant 7 : index
    %c0_65 = arith.constant 0 : index
    %c0_66 = arith.constant 0 : index
    %102 = vector.load %arg4[%c7_64, %c0_65, %c0_66] : memref<16x8x128xf32, #tpu.memory_space<vmem>>, vector<1x8x128xf32>
    %103 = vector.shape_cast %102 : vector<1x8x128xf32> to vector<8x128xf32>
    %104 = arith.addf %101, %103 : vector<8x128xf32>
    %c0_67 = arith.constant 0 : index
    %c0_68 = arith.constant 0 : index
    %105 = vector.load %arg5[%c0_67, %c0_68] : memref<8x128xf32, #tpu.memory_space<vmem>>, vector<8x128xf32>
    tpu.vector_store %arg5[%c0_67, %c0_68], %97 {strides = array<i32>} : memref<8x128xf32, #tpu.memory_space<vmem>>, vector<8x128xf32>,
    %c0_69 = arith.constant 0 : index
    %c0_70 = arith.constant 0 : index
    %106 = vector.load %arg6[%c0_69, %c0_70] : memref<8x128xf32, #tpu.memory_space<vmem>>, vector<8x128xf32>
    tpu.vector_store %arg6[%c0_69, %c0_70], %104 {strides = array<i32>} : memref<8x128xf32, #tpu.memory_space<vmem>>, vector<8x128xf32>,
    %c0_71 = arith.constant 0 : index
    %c0_72 = arith.constant 0 : index
    %107 = vector.load %arg2[%c0_71, %c0_72] : memref<8x128xf32, #tpu.memory_space<vmem>>, vector<8x128xf32>
    %cst_73 = arith.constant 5.000000e-01 : f32
    %108 = vector.broadcast %cst_73 : f32 to vector<8x128xf32>
    %109 = arith.mulf %108, %104 : vector<8x128xf32>
    %110 = math.exp %109 : vector<8x128xf32>
    %111 = arith.mulf %107, %110 : vector<8x128xf32>
    %112 = arith.addf %111, %97 : vector<8x128xf32>
    %113 = arith.truncf %112 : vector<8x128xf32> to vector<8x128xbf16>
    %c8 = arith.constant 8 : index
    %c0_74 = arith.constant 0 : index
    %c0_75 = arith.constant 0 : index
    %114 = vector.load %arg3[%c8, %c0_74, %c0_75] : memref<16x128x128xbf16, #tpu.memory_space<vmem>>, vector<1x128x128xbf16>
    %115 = vector.shape_cast %114 : vector<1x128x128xbf16> to vector<128x128xbf16>
    %cst_76 = arith.constant dense<0.000000e+00> : vector<8x128xf32>
    %116 = tpu.matmul %113, %115, %cst_76 {dimension_numbers = #tpu.dot_dimension_numbers<[1], [0], [0], [1], [0, 0, 1, 1], [], []>} : vector<8x128xbf16>, vector<128x128xbf16>, vector<8x128xf32> -> vector<8x128xf32>
    %c8_77 = arith.constant 8 : index
    %c0_78 = arith.constant 0 : index
    %c0_79 = arith.constant 0 : index
    %117 = vector.load %arg4[%c8_77, %c0_78, %c0_79] : memref<16x8x128xf32, #tpu.memory_space<vmem>>, vector<1x8x128xf32>
    %118 = vector.shape_cast %117 : vector<1x8x128xf32> to vector<8x128xf32>
    %119 = arith.addf %116, %118 : vector<8x128xf32>
    %cst_80 = arith.constant 0.000000e+00 : f32
    %120 = vector.broadcast %cst_80 : f32 to vector<8x128xf32>
    %121 = arith.cmpf ogt, %119, %120 : vector<8x128xf32>
    %cst_81 = arith.constant 0.000000e+00 : f32
    %122 = vector.broadcast %cst_81 : f32 to vector<8x128xf32>
    %123 = arith.minimumf %119, %122 : vector<8x128xf32>
    %124 = math.exp %123 : vector<8x128xf32>
    %cst_82 = arith.constant 1.000000e+00 : f32
    %125 = vector.broadcast %cst_82 : f32 to vector<8x128xf32>
    %126 = arith.subf %124, %125 : vector<8x128xf32>
    %127 = arith.select %121, %119, %126 : vector<8x128xi1>, vector<8x128xf32>
    %128 = arith.truncf %127 : vector<8x128xf32> to vector<8x128xbf16>
    %c9 = arith.constant 9 : index
    %c0_83 = arith.constant 0 : index
    %c0_84 = arith.constant 0 : index
    %129 = vector.load %arg3[%c9, %c0_83, %c0_84] : memref<16x128x128xbf16, #tpu.memory_space<vmem>>, vector<1x128x128xbf16>
    %130 = vector.shape_cast %129 : vector<1x128x128xbf16> to vector<128x128xbf16>
    %cst_85 = arith.constant dense<0.000000e+00> : vector<8x128xf32>
    %131 = tpu.matmul %128, %130, %cst_85 {dimension_numbers = #tpu.dot_dimension_numbers<[1], [0], [0], [1], [0, 0, 1, 1], [], []>} : vector<8x128xbf16>, vector<128x128xbf16>, vector<8x128xf32> -> vector<8x128xf32>
    %c9_86 = arith.constant 9 : index
    %c0_87 = arith.constant 0 : index
    %c0_88 = arith.constant 0 : index
    %132 = vector.load %arg4[%c9_86, %c0_87, %c0_88] : memref<16x8x128xf32, #tpu.memory_space<vmem>>, vector<1x8x128xf32>
    %133 = vector.shape_cast %132 : vector<1x8x128xf32> to vector<8x128xf32>
    %134 = arith.addf %131, %133 : vector<8x128xf32>
    %cst_89 = arith.constant 0.000000e+00 : f32
    %135 = vector.broadcast %cst_89 : f32 to vector<8x128xf32>
    %136 = arith.cmpf ogt, %134, %135 : vector<8x128xf32>
    %cst_90 = arith.constant 0.000000e+00 : f32
    %137 = vector.broadcast %cst_90 : f32 to vector<8x128xf32>
    %138 = arith.minimumf %134, %137 : vector<8x128xf32>
    %139 = math.exp %138 : vector<8x128xf32>
    %cst_91 = arith.constant 1.000000e+00 : f32
    %140 = vector.broadcast %cst_91 : f32 to vector<8x128xf32>
    %141 = arith.subf %139, %140 : vector<8x128xf32>
    %142 = arith.select %136, %134, %141 : vector<8x128xi1>, vector<8x128xf32>
    %143 = arith.truncf %142 : vector<8x128xf32> to vector<8x128xbf16>
    %c10 = arith.constant 10 : index
    %c0_92 = arith.constant 0 : index
    %c0_93 = arith.constant 0 : index
    %144 = vector.load %arg3[%c10, %c0_92, %c0_93] : memref<16x128x128xbf16, #tpu.memory_space<vmem>>, vector<1x128x128xbf16>
    %145 = vector.shape_cast %144 : vector<1x128x128xbf16> to vector<128x128xbf16>
    %cst_94 = arith.constant dense<0.000000e+00> : vector<8x128xf32>
    %146 = tpu.matmul %143, %145, %cst_94 {dimension_numbers = #tpu.dot_dimension_numbers<[1], [0], [0], [1], [0, 0, 1, 1], [], []>} : vector<8x128xbf16>, vector<128x128xbf16>, vector<8x128xf32> -> vector<8x128xf32>
    %c10_95 = arith.constant 10 : index
    %c0_96 = arith.constant 0 : index
    %c0_97 = arith.constant 0 : index
    %147 = vector.load %arg4[%c10_95, %c0_96, %c0_97] : memref<16x8x128xf32, #tpu.memory_space<vmem>>, vector<1x8x128xf32>
    %148 = vector.shape_cast %147 : vector<1x8x128xf32> to vector<8x128xf32>
    %149 = arith.addf %146, %148 : vector<8x128xf32>
    %cst_98 = arith.constant 0.000000e+00 : f32
    %150 = vector.broadcast %cst_98 : f32 to vector<8x128xf32>
    %151 = arith.cmpf ogt, %149, %150 : vector<8x128xf32>
    %cst_99 = arith.constant 0.000000e+00 : f32
    %152 = vector.broadcast %cst_99 : f32 to vector<8x128xf32>
    %153 = arith.minimumf %149, %152 : vector<8x128xf32>
    %154 = math.exp %153 : vector<8x128xf32>
    %cst_100 = arith.constant 1.000000e+00 : f32
    %155 = vector.broadcast %cst_100 : f32 to vector<8x128xf32>
    %156 = arith.subf %154, %155 : vector<8x128xf32>
    %157 = arith.select %151, %149, %156 : vector<8x128xi1>, vector<8x128xf32>
    %158 = arith.truncf %157 : vector<8x128xf32> to vector<8x128xbf16>
    %c11 = arith.constant 11 : index
    %c0_101 = arith.constant 0 : index
    %c0_102 = arith.constant 0 : index
    %159 = vector.load %arg3[%c11, %c0_101, %c0_102] : memref<16x128x128xbf16, #tpu.memory_space<vmem>>, vector<1x128x128xbf16>
    %160 = vector.shape_cast %159 : vector<1x128x128xbf16> to vector<128x128xbf16>
    %cst_103 = arith.constant dense<0.000000e+00> : vector<8x128xf32>
    %161 = tpu.matmul %158, %160, %cst_103 {dimension_numbers = #tpu.dot_dimension_numbers<[1], [0], [0], [1], [0, 0, 1, 1], [], []>} : vector<8x128xbf16>, vector<128x128xbf16>, vector<8x128xf32> -> vector<8x128xf32>
    %c11_104 = arith.constant 11 : index
    %c0_105 = arith.constant 0 : index
    %c0_106 = arith.constant 0 : index
    %162 = vector.load %arg4[%c11_104, %c0_105, %c0_106] : memref<16x8x128xf32, #tpu.memory_space<vmem>>, vector<1x8x128xf32>
    %163 = vector.shape_cast %162 : vector<1x8x128xf32> to vector<8x128xf32>
    %164 = arith.addf %161, %163 : vector<8x128xf32>
    %cst_107 = arith.constant 0.000000e+00 : f32
    %165 = vector.broadcast %cst_107 : f32 to vector<8x128xf32>
    %166 = arith.cmpf ogt, %164, %165 : vector<8x128xf32>
    %cst_108 = arith.constant 0.000000e+00 : f32
    %167 = vector.broadcast %cst_108 : f32 to vector<8x128xf32>
    %168 = arith.minimumf %164, %167 : vector<8x128xf32>
    %169 = math.exp %168 : vector<8x128xf32>
    %cst_109 = arith.constant 1.000000e+00 : f32
    %170 = vector.broadcast %cst_109 : f32 to vector<8x128xf32>
    %171 = arith.subf %169, %170 : vector<8x128xf32>
    %172 = arith.select %166, %164, %171 : vector<8x128xi1>, vector<8x128xf32>
    %173 = arith.truncf %172 : vector<8x128xf32> to vector<8x128xbf16>
    %c12 = arith.constant 12 : index
    %c0_110 = arith.constant 0 : index
    %c0_111 = arith.constant 0 : index
    %174 = vector.load %arg3[%c12, %c0_110, %c0_111] : memref<16x128x128xbf16, #tpu.memory_space<vmem>>, vector<1x128x128xbf16>
    %175 = vector.shape_cast %174 : vector<1x128x128xbf16> to vector<128x128xbf16>
    %cst_112 = arith.constant dense<0.000000e+00> : vector<8x128xf32>
    %176 = tpu.matmul %173, %175, %cst_112 {dimension_numbers = #tpu.dot_dimension_numbers<[1], [0], [0], [1], [0, 0, 1, 1], [], []>} : vector<8x128xbf16>, vector<128x128xbf16>, vector<8x128xf32> -> vector<8x128xf32>
    %c12_113 = arith.constant 12 : index
    %c0_114 = arith.constant 0 : index
    %c0_115 = arith.constant 0 : index
    %177 = vector.load %arg4[%c12_113, %c0_114, %c0_115] : memref<16x8x128xf32, #tpu.memory_space<vmem>>, vector<1x8x128xf32>
    %178 = vector.shape_cast %177 : vector<1x8x128xf32> to vector<8x128xf32>
    %179 = arith.addf %176, %178 : vector<8x128xf32>
    %cst_116 = arith.constant 0.000000e+00 : f32
    %180 = vector.broadcast %cst_116 : f32 to vector<8x128xf32>
    %181 = arith.cmpf ogt, %179, %180 : vector<8x128xf32>
    %cst_117 = arith.constant 0.000000e+00 : f32
    %182 = vector.broadcast %cst_117 : f32 to vector<8x128xf32>
    %183 = arith.minimumf %179, %182 : vector<8x128xf32>
    %184 = math.exp %183 : vector<8x128xf32>
    %cst_118 = arith.constant 1.000000e+00 : f32
    %185 = vector.broadcast %cst_118 : f32 to vector<8x128xf32>
    %186 = arith.subf %184, %185 : vector<8x128xf32>
    %187 = arith.select %181, %179, %186 : vector<8x128xi1>, vector<8x128xf32>
    %188 = arith.truncf %187 : vector<8x128xf32> to vector<8x128xbf16>
    %c13 = arith.constant 13 : index
    %c0_119 = arith.constant 0 : index
    %c0_120 = arith.constant 0 : index
    %189 = vector.load %arg3[%c13, %c0_119, %c0_120] : memref<16x128x128xbf16, #tpu.memory_space<vmem>>, vector<1x128x128xbf16>
    %190 = vector.shape_cast %189 : vector<1x128x128xbf16> to vector<128x128xbf16>
    %cst_121 = arith.constant dense<0.000000e+00> : vector<8x128xf32>
    %191 = tpu.matmul %188, %190, %cst_121 {dimension_numbers = #tpu.dot_dimension_numbers<[1], [0], [0], [1], [0, 0, 1, 1], [], []>} : vector<8x128xbf16>, vector<128x128xbf16>, vector<8x128xf32> -> vector<8x128xf32>
    %c13_122 = arith.constant 13 : index
    %c0_123 = arith.constant 0 : index
    %c0_124 = arith.constant 0 : index
    %192 = vector.load %arg4[%c13_122, %c0_123, %c0_124] : memref<16x8x128xf32, #tpu.memory_space<vmem>>, vector<1x8x128xf32>
    %193 = vector.shape_cast %192 : vector<1x8x128xf32> to vector<8x128xf32>
    %194 = arith.addf %191, %193 : vector<8x128xf32>
    %cst_125 = arith.constant 0.000000e+00 : f32
    %195 = vector.broadcast %cst_125 : f32 to vector<8x128xf32>
    %196 = arith.cmpf ogt, %194, %195 : vector<8x128xf32>
    %cst_126 = arith.constant 0.000000e+00 : f32
    %197 = vector.broadcast %cst_126 : f32 to vector<8x128xf32>
    %198 = arith.minimumf %194, %197 : vector<8x128xf32>
    %199 = math.exp %198 : vector<8x128xf32>
    %cst_127 = arith.constant 1.000000e+00 : f32
    %200 = vector.broadcast %cst_127 : f32 to vector<8x128xf32>
    %201 = arith.subf %199, %200 : vector<8x128xf32>
    %202 = arith.select %196, %194, %201 : vector<8x128xi1>, vector<8x128xf32>
    %203 = arith.truncf %202 : vector<8x128xf32> to vector<8x128xbf16>
    %c14 = arith.constant 14 : index
    %c0_128 = arith.constant 0 : index
    %c0_129 = arith.constant 0 : index
    %204 = vector.load %arg3[%c14, %c0_128, %c0_129] : memref<16x128x128xbf16, #tpu.memory_space<vmem>>, vector<1x128x128xbf16>
    %205 = vector.shape_cast %204 : vector<1x128x128xbf16> to vector<128x128xbf16>
    %cst_130 = arith.constant dense<0.000000e+00> : vector<8x128xf32>
    %206 = tpu.matmul %203, %205, %cst_130 {dimension_numbers = #tpu.dot_dimension_numbers<[1], [0], [0], [1], [0, 0, 1, 1], [], []>} : vector<8x128xbf16>, vector<128x128xbf16>, vector<8x128xf32> -> vector<8x128xf32>
    %c14_131 = arith.constant 14 : index
    %c0_132 = arith.constant 0 : index
    %c0_133 = arith.constant 0 : index
    %207 = vector.load %arg4[%c14_131, %c0_132, %c0_133] : memref<16x8x128xf32, #tpu.memory_space<vmem>>, vector<1x8x128xf32>
    %208 = vector.shape_cast %207 : vector<1x8x128xf32> to vector<8x128xf32>
    %209 = arith.addf %206, %208 : vector<8x128xf32>
    %cst_134 = arith.constant 0.000000e+00 : f32
    %210 = vector.broadcast %cst_134 : f32 to vector<8x128xf32>
    %211 = arith.cmpf ogt, %209, %210 : vector<8x128xf32>
    %cst_135 = arith.constant 0.000000e+00 : f32
    %212 = vector.broadcast %cst_135 : f32 to vector<8x128xf32>
    %213 = arith.minimumf %209, %212 : vector<8x128xf32>
    %214 = math.exp %213 : vector<8x128xf32>
    %cst_136 = arith.constant 1.000000e+00 : f32
    %215 = vector.broadcast %cst_136 : f32 to vector<8x128xf32>
    %216 = arith.subf %214, %215 : vector<8x128xf32>
    %217 = arith.select %211, %209, %216 : vector<8x128xi1>, vector<8x128xf32>
    %c0_137 = arith.constant 0 : index
    %c0_138 = arith.constant 0 : index
    %218 = vector.load %arg7[%c0_137, %c0_138] : memref<8x128xf32, #tpu.memory_space<vmem>>, vector<8x128xf32>
    tpu.vector_store %arg7[%c0_137, %c0_138], %217 {strides = array<i32>} : memref<8x128xf32, #tpu.memory_space<vmem>>, vector<8x128xf32>,
    return
  }
  func.func @transform_0(%arg0: i32) -> (i32, i32) {
    %c0_i32 = arith.constant 0 : i32
    %c0_i32_0 = arith.constant 0 : i32
    %c0_i32_1 = arith.constant 0 : i32
    return %c0_i32, %c0_i32_0 : i32, i32
  }
  func.func @transform_1(%arg0: i32) -> (i32, i32) {
    %c0_i32 = arith.constant 0 : i32
    %c0_i32_0 = arith.constant 0 : i32
    %c0_i32_1 = arith.constant 0 : i32
    return %c0_i32, %c0_i32_0 : i32, i32
  }
  func.func @transform_2(%arg0: i32) -> (i32, i32, i32) {
    %c0_i32 = arith.constant 0 : i32
    %c0_i32_0 = arith.constant 0 : i32
    %c0_i32_1 = arith.constant 0 : i32
    %c0_i32_2 = arith.constant 0 : i32
    return %c0_i32, %c0_i32_0, %c0_i32_1 : i32, i32, i32
  }
  func.func @transform_3(%arg0: i32) -> (i32, i32, i32) {
    %c0_i32 = arith.constant 0 : i32
    %c0_i32_0 = arith.constant 0 : i32
    %c0_i32_1 = arith.constant 0 : i32
    %c0_i32_2 = arith.constant 0 : i32
    return %c0_i32, %c0_i32_0, %c0_i32_1 : i32, i32, i32
  }
  func.func @transform_4(%arg0: i32) -> (i32, i32) {
    %c0_i32 = arith.constant 0 : i32
    %c0_i32_0 = arith.constant 0 : i32
    %c0_i32_1 = arith.constant 0 : i32
    return %c0_i32, %c0_i32_0 : i32, i32
  }
  func.func @transform_5(%arg0: i32) -> (i32, i32) {
    %c0_i32 = arith.constant 0 : i32
    %c0_i32_0 = arith.constant 0 : i32
    %c0_i32_1 = arith.constant 0 : i32
    return %c0_i32, %c0_i32_0 : i32, i32
  }
  func.func @transform_6(%arg0: i32) -> (i32, i32) {
    %c0_i32 = arith.constant 0 : i32
    %c0_i32_0 = arith.constant 0 : i32
    %c0_i32_1 = arith.constant 0 : i32
    return %c0_i32, %c0_i32_0 : i32, i32
  }
}

</mosaic_0001>

<llo_original>
// kernel: graph_vae_forward.1
$region0: #{graph_vae_forward.1}
  #allocation0 [shape = 'u32[]', space=smem, size = 0x4, offset = 0x4, fixed_abs, tag = 'smem constant byte address 0x4 - core index']
  #allocation1 [shape = 'u32[72,128]{1,0:T(1,128)}', space=vmem, size = 0x9000, scoped, tag = 'internal scratch']
  %s0 = inlined_call_operand.vmem [shape: f32[8,128], index: 0, kind: input, shape index: {}]
  %s1 = inlined_call_operand.vmem [shape: f32[8,128], index: 1, kind: input, shape index: {}]
  %s2 = inlined_call_operand.hbm [shape: bf16[16,128,128], index: 2, kind: input, shape index: {}]
  %s3 = inlined_call_operand.hbm [shape: f32[16,8,128], index: 3, kind: input, shape index: {}]
  %s4 = inlined_call_operand.vmem [shape: f32[8,128], index: 4, kind: output, shape index: {0}]
  %s5 = inlined_call_operand.vmem [shape: f32[8,128], index: 5, kind: output, shape index: {1}]
  %s6 = inlined_call_operand.vmem [shape: f32[8,128], index: 6, kind: output, shape index: {2}]
  %7 = xla_tuple %s4, %s5, %s6
  %s8 = sld [smem:[#allocation0]]
  $region50: #{graph_vae_forward.1} parent=0
    _
  %s10 = ssub.s32 1, %s8
  %s11 = scalar_select 0, %s10, %s8
  $region1: #{graph_vae_forward.1} parent=0
    #allocation2 [shape = 'u8[524288]{0}', space=vmem, size = 0x80000, scoped, tag = 'input window, operand 2, single buffered']
    #allocation3 [shape = 's32[1]{0}', space=sflag, size = 0x4, scoped, tag = 'scoped memory for graph_vae_forward.1']
    #allocation4 [shape = 'u8[65536]{0}', space=vmem, size = 0x10000, scoped, tag = 'input window, operand 3, single buffered']
    #allocation5 [shape = 's32[1]{0}', space=sflag, size = 0x4, scoped, tag = 'scoped memory for graph_vae_forward.1']
    %12 = vsyncpa [#allocation3], 0
    %13 = vsyncpa [#allocation5], 0
    // Predicated region
    $region2: #{graph_vae_forward.1} parent=1 // pred_check
      _
    $region3: #{graph_vae_forward.1} parent=1 // pred_check_branch
      %15 = sbr.rel (0) target = $region5
    $region4: #{graph_vae_forward.1} parent=1 // pred_region
      _
    $region5: #{graph_vae_forward.1} parent=1 // pred_fallthru
      _
    // Predicated region
    $region6: #{graph_vae_forward.1} parent=1 // pred_check
      _
    $region7: #{graph_vae_forward.1} parent=1 // pred_check_branch
      %17 = sbr.rel (0) target = $region9
    $region8: #{graph_vae_forward.1} parent=1 // pred_region
      _
    $region9: #{graph_vae_forward.1} parent=1 // pred_fallthru
      _
    // Predicated region
    $region10: #{graph_vae_forward.1} parent=1 // pred_check
      _
    $region11: #{graph_vae_forward.1} parent=1 // pred_check_branch
      %19 = sbr.rel (0) target = $region13
    $region12: #{graph_vae_forward.1} parent=1 // pred_region
      %21 = vsyncadd [#allocation3], 0
      %s22 = sshll.u32 %s2, 4
      %s23 = int_to_ptr.hbm [resolvable:$true] %s22
      %s24 = sshll.u32 [#allocation2], 4
      %s25 = int_to_ptr.vmem [resolvable:$true] %s24
      %30 = dma.hbm_to_vmem [thread:$0]  %s23, 16384, %s25, [#allocation3], 64, 64, 4
    $region13: #{graph_vae_forward.1} parent=1 // pred_fallthru
      _
    // Predicated region
    $region14: #{graph_vae_forward.1} parent=1 // pred_check
      _
    $region15: #{graph_vae_forward.1} parent=1 // pred_check_branch
      %32 = sbr.rel (0) target = $region17
    $region16: #{graph_vae_forward.1} parent=1 // pred_region
      %34 = vsyncadd [#allocation5], 0
      %s35 = sshll.u32 %s3, 4
      %s36 = int_to_ptr.hbm [resolvable:$true] %s35
      %s37 = sshll.u32 [#allocation4], 4
      %s38 = int_to_ptr.vmem [resolvable:$true] %s37
      %43 = dma.hbm_to_vmem [thread:$0]  %s36, 2048, %s38, [#allocation5], 128, 128, 8
    $region17: #{graph_vae_forward.1} parent=1 // pred_fallthru
      _
    // Predicated region
    $region18: #{graph_vae_forward.1} parent=1 // pred_check
      _
    $region19: #{graph_vae_forward.1} parent=1 // pred_check_branch
      %45 = sbr.rel (0) target = $region21
    $region20: #{graph_vae_forward.1} parent=1 // pred_region
      %47 = dma.done [#allocation3], 16384
    $region21: #{graph_vae_forward.1} parent=1 // pred_fallthru
      _
    // Predicated region
    $region22: #{graph_vae_forward.1} parent=1 // pred_check
      _
    $region23: #{graph_vae_forward.1} parent=1 // pred_check_branch
      %49 = sbr.rel (0) target = $region25
    $region24: #{graph_vae_forward.1} parent=1 // pred_region
      %51 = dma.done [#allocation5], 2048
    $region25: #{graph_vae_forward.1} parent=1 // pred_fallthru
      _
    %v52 = vld [vmem:[%s0] sm:$0xff]
    %v53 = vpack.c.bf16 %v52, %v52
    %v54 = vld [vmem:[#allocation2] sm:$0xf]
    %v55 = vld [vmem:[#allocation2 + $0x4] sm:$0xf]
    %v56 = vld [vmem:[#allocation2 + $0x8] sm:$0xf]
    %v57 = vld [vmem:[#allocation2 + $0xc] sm:$0xf]
    %v58 = vld [vmem:[#allocation2 + $0x10] sm:$0xf]
    %v59 = vld [vmem:[#allocation2 + $0x14] sm:$0xf]
    %v60 = vld [vmem:[#allocation2 + $0x18] sm:$0xf]
    %v61 = vld [vmem:[#allocation2 + $0x1c] sm:$0xf]
    %v62 = vld [vmem:[#allocation2 + $0x20] sm:$0xf]
    %v63 = vld [vmem:[#allocation2 + $0x24] sm:$0xf]
    %v64 = vld [vmem:[#allocation2 + $0x28] sm:$0xf]
    %v65 = vld [vmem:[#allocation2 + $0x2c] sm:$0xf]
    %v66 = vld [vmem:[#allocation2 + $0x30] sm:$0xf]
    %v67 = vld [vmem:[#allocation2 + $0x34] sm:$0xf]
    %v68 = vld [vmem:[#allocation2 + $0x38] sm:$0xf]
    %v69 = vld [vmem:[#allocation2 + $0x3c] sm:$0xf]
    %v70 = vld [vmem:[#allocation4] sm:$0xff]
    %v87 = vunpack.c.l.b16 %v54
    %v88 = vunpack.c.l.b16 %v55
    %v89 = vunpack.c.l.b16 %v56
    %v90 = vunpack.c.l.b16 %v57
    %v91 = vunpack.c.l.b16 %v58
    %v92 = vunpack.c.l.b16 %v59
    %v93 = vunpack.c.l.b16 %v60
    %v94 = vunpack.c.l.b16 %v61
    %v95 = vunpack.c.l.b16 %v62
    %v96 = vunpack.c.l.b16 %v63
    %v97 = vunpack.c.l.b16 %v64
    %v98 = vunpack.c.l.b16 %v65
    %v99 = vunpack.c.l.b16 %v66
    %v100 = vunpack.c.l.b16 %v67
    %v101 = vunpack.c.l.b16 %v68
    %v102 = vunpack.c.l.b16 %v69
    %v103 = vpack.c.b16 %v88, %v87
    %v104 = vpack.c.b16 %v90, %v89
    %v105 = vpack.c.b16 %v92, %v91
    %v106 = vpack.c.b16 %v94, %v93
    %v107 = vpack.c.b16 %v96, %v95
    %v108 = vpack.c.b16 %v98, %v97
    %v109 = vpack.c.b16 %v100, %v99
    %v110 = vpack.c.b16 %v102, %v101
    %119 = vmatpush.bf16.msra.mxu0 %v110
    %120 = vmatpush.bf16.msra.mxu0 %v109
    %121 = vmatpush.bf16.msra.mxu0 %v108
    %122 = vmatpush.bf16.msra.mxu0 %v107
    %123 = vmatpush.bf16.msra.mxu0 %v106
    %124 = vmatpush.bf16.msra.mxu0 %v105
    %125 = vmatpush.bf16.msra.mxu0 %v104
    %126 = vmatpush.bf16.msra.mxu0 %v103
    %127 = vmatmul.bf16.gmra.mxu0 %v53
    %v128 = vpop.f32.mrf.mxu0
    %v129 = vadd.f32 %v70, %v128
    %v130 = vpop.f32.mrf.mxu0
    %131 = vdwg.mxu0
    %vm132 = vcmp.gt.f32.partialorder %v129, 0.0
    %v133 = vmin.f32 %v129, 0.0
    %v134 = vmul.f32 %v133, 1.442695
    %v135 = vpow.pop %v134
    %v136 = vsub.f32 %v135, 1.0
    %v137 = vsel %vm132, %v129, %v136
    %v138 = vpack.c.bf16 %v137, %v137
    %s139 = scalar_lea.vmem [#allocation2], 64
    %v140 = vld [vmem:[%s139] sm:$0xf]
    %v141 = vld [vmem:[%s139 + $0x4] sm:$0xf]
    %v142 = vld [vmem:[%s139 + $0x8] sm:$0xf]
    %v143 = vld [vmem:[%s139 + $0xc] sm:$0xf]
    %v144 = vld [vmem:[%s139 + $0x10] sm:$0xf]
    %v145 = vld [vmem:[%s139 + $0x14] sm:$0xf]
    %v146 = vld [vmem:[%s139 + $0x18] sm:$0xf]
    %v147 = vld [vmem:[%s139 + $0x1c] sm:$0xf]
    %v148 = vld [vmem:[%s139 + $0x20] sm:$0xf]
    %v149 = vld [vmem:[%s139 + $0x24] sm:$0xf]
    %v150 = vld [vmem:[%s139 + $0x28] sm:$0xf]
    %v151 = vld [vmem:[%s139 + $0x2c] sm:$0xf]
    %v152 = vld [vmem:[%s139 + $0x30] sm:$0xf]
    %v153 = vld [vmem:[%s139 + $0x34] sm:$0xf]
    %v154 = vld [vmem:[%s139 + $0x38] sm:$0xf]
    %v155 = vld [vmem:[%s139 + $0x3c] sm:$0xf]
    %s156 = scalar_lea.vmem [#allocation4], 8
    %v157 = vld [vmem:[%s156] sm:$0xff]
    %v174 = vunpack.c.l.b16 %v140
    %v175 = vunpack.c.l.b16 %v141
    %v176 = vunpack.c.l.b16 %v142
    %v177 = vunpack.c.l.b16 %v143
    %v178 = vunpack.c.l.b16 %v144
    %v179 = vunpack.c.l.b16 %v145
    %v180 = vunpack.c.l.b16 %v146
    %v181 = vunpack.c.l.b16 %v147
    %v182 = vunpack.c.l.b16 %v148
    %v183 = vunpack.c.l.b16 %v149
    %v184 = vunpack.c.l.b16 %v150
    %v185 = vunpack.c.l.b16 %v151
    %v186 = vunpack.c.l.b16 %v152
    %v187 = vunpack.c.l.b16 %v153
    %v188 = vunpack.c.l.b16 %v154
    %v189 = vunpack.c.l.b16 %v155
    %v190 = vpack.c.b16 %v175, %v174
    %v191 = vpack.c.b16 %v177, %v176
    %v192 = vpack.c.b16 %v179, %v178
    %v193 = vpack.c.b16 %v181, %v180
    %v194 = vpack.c.b16 %v183, %v182
    %v195 = vpack.c.b16 %v185, %v184
    %v196 = vpack.c.b16 %v187, %v186
    %v197 = vpack.c.b16 %v189, %v188
    %206 = vmatpush.bf16.msra.mxu0 %v197
    %207 = vmatpush.bf16.msra.mxu0 %v196
    %208 = vmatpush.bf16.msra.mxu0 %v195
    %209 = vmatpush.bf16.msra.mxu0 %v194
    %210 = vmatpush.bf16.msra.mxu0 %v193
    %211 = vmatpush.bf16.msra.mxu0 %v192
    %212 = vmatpush.bf16.msra.mxu0 %v191
    %213 = vmatpush.bf16.msra.mxu0 %v190
    %214 = vmatmul.bf16.gmra.mxu0 %v138
    %v215 = vpop.f32.mrf.mxu0
    %v216 = vadd.f32 %v157, %v215
    %v217 = vpop.f32.mrf.mxu0
    %218 = vdwg.mxu0
    %vm219 = vcmp.gt.f32.partialorder %v216, 0.0
    %v220 = vmin.f32 %v216, 0.0
    %v221 = vmul.f32 %v220, 1.442695
    %v222 = vpow.pop %v221
    %v223 = vsub.f32 %v222, 1.0
    %v224 = vsel %vm219, %v216, %v223
    %v225 = vpack.c.bf16 %v224, %v224
    %s226 = scalar_lea.vmem [#allocation2], 128
    %v227 = vld [vmem:[%s226] sm:$0xf]
    %v228 = vld [vmem:[%s226 + $0x4] sm:$0xf]
    %v229 = vld [vmem:[%s226 + $0x8] sm:$0xf]
    %v230 = vld [vmem:[%s226 + $0xc] sm:$0xf]
    %v231 = vld [vmem:[%s226 + $0x10] sm:$0xf]
    %v232 = vld [vmem:[%s226 + $0x14] sm:$0xf]
    %v233 = vld [vmem:[%s226 + $0x18] sm:$0xf]
    %v234 = vld [vmem:[%s226 + $0x1c] sm:$0xf]
    %v235 = vld [vmem:[%s226 + $0x20] sm:$0xf]
    %v236 = vld [vmem:[%s226 + $0x24] sm:$0xf]
    %v237 = vld [vmem:[%s226 + $0x28] sm:$0xf]
    %v238 = vld [vmem:[%s226 + $0x2c] sm:$0xf]
    %v239 = vld [vmem:[%s226 + $0x30] sm:$0xf]
    %v240 = vld [vmem:[%s226 + $0x34] sm:$0xf]
    %v241 = vld [vmem:[%s226 + $0x38] sm:$0xf]
    %v242 = vld [vmem:[%s226 + $0x3c] sm:$0xf]
    %s243 = scalar_lea.vmem [#allocation4], 16
    %v244 = vld [vmem:[%s243] sm:$0xff]
    %v261 = vunpack.c.l.b16 %v227
    %v262 = vunpack.c.l.b16 %v228
    %v263 = vunpack.c.l.b16 %v229
    %v264 = vunpack.c.l.b16 %v230
    %v265 = vunpack.c.l.b16 %v231
    %v266 = vunpack.c.l.b16 %v232
    %v267 = vunpack.c.l.b16 %v233
    %v268 = vunpack.c.l.b16 %v234
    %v269 = vunpack.c.l.b16 %v235
    %v270 = vunpack.c.l.b16 %v236
    %v271 = vunpack.c.l.b16 %v237
    %v272 = vunpack.c.l.b16 %v238
    %v273 = vunpack.c.l.b16 %v239
    %v274 = vunpack.c.l.b16 %v240
    %v275 = vunpack.c.l.b16 %v241
    %v276 = vunpack.c.l.b16 %v242
    %v277 = vpack.c.b16 %v262, %v261
    %v278 = vpack.c.b16 %v264, %v263
    %v279 = vpack.c.b16 %v266, %v265
    %v280 = vpack.c.b16 %v268, %v267
    %v281 = vpack.c.b16 %v270, %v269
    %v282 = vpack.c.b16 %v272, %v271
    %v283 = vpack.c.b16 %v274, %v273
    %v284 = vpack.c.b16 %v276, %v275
    %293 = vmatpush.bf16.msra.mxu0 %v284
    %294 = vmatpush.bf16.msra.mxu0 %v283
    %295 = vmatpush.bf16.msra.mxu0 %v282
    %296 = vmatpush.bf16.msra.mxu0 %v281
    %297 = vmatpush.bf16.msra.mxu0 %v280
    %298 = vmatpush.bf16.msra.mxu0 %v279
    %299 = vmatpush.bf16.msra.mxu0 %v278
    %300 = vmatpush.bf16.msra.mxu0 %v277
    %301 = vmatmul.bf16.gmra.mxu0 %v225
    %v302 = vpop.f32.mrf.mxu0
    %v303 = vadd.f32 %v244, %v302
    %v304 = vpop.f32.mrf.mxu0
    %305 = vdwg.mxu0
    %vm306 = vcmp.gt.f32.partialorder %v303, 0.0
    %v307 = vmin.f32 %v303, 0.0
    %v308 = vmul.f32 %v307, 1.442695
    %v309 = vpow.pop %v308
    %v310 = vsub.f32 %v309, 1.0
    %v311 = vsel %vm306, %v303, %v310
    %v312 = vpack.c.bf16 %v311, %v311
    %s313 = scalar_lea.vmem [#allocation2], 192
    %v314 = vld [vmem:[%s313] sm:$0xf]
    %v315 = vld [vmem:[%s313 + $0x4] sm:$0xf]
    %v316 = vld [vmem:[%s313 + $0x8] sm:$0xf]
    %v317 = vld [vmem:[%s313 + $0xc] sm:$0xf]
    %v318 = vld [vmem:[%s313 + $0x10] sm:$0xf]
    %v319 = vld [vmem:[%s313 + $0x14] sm:$0xf]
    %v320 = vld [vmem:[%s313 + $0x18] sm:$0xf]
    %v321 = vld [vmem:[%s313 + $0x1c] sm:$0xf]
    %v322 = vld [vmem:[%s313 + $0x20] sm:$0xf]
    %v323 = vld [vmem:[%s313 + $0x24] sm:$0xf]
    %v324 = vld [vmem:[%s313 + $0x28] sm:$0xf]
    %v325 = vld [vmem:[%s313 + $0x2c] sm:$0xf]
    %v326 = vld [vmem:[%s313 + $0x30] sm:$0xf]
    %v327 = vld [vmem:[%s313 + $0x34] sm:$0xf]
    %v328 = vld [vmem:[%s313 + $0x38] sm:$0xf]
    %v329 = vld [vmem:[%s313 + $0x3c] sm:$0xf]
    %s330 = scalar_lea.vmem [#allocation4], 24
    %v331 = vld [vmem:[%s330] sm:$0xff]
    %v348 = vunpack.c.l.b16 %v314
    %v349 = vunpack.c.l.b16 %v315
    %v350 = vunpack.c.l.b16 %v316
    %v351 = vunpack.c.l.b16 %v317
    %v352 = vunpack.c.l.b16 %v318
    %v353 = vunpack.c.l.b16 %v319
    %v354 = vunpack.c.l.b16 %v320
    %v355 = vunpack.c.l.b16 %v321
    %v356 = vunpack.c.l.b16 %v322
    %v357 = vunpack.c.l.b16 %v323
    %v358 = vunpack.c.l.b16 %v324
    %v359 = vunpack.c.l.b16 %v325
    %v360 = vunpack.c.l.b16 %v326
    %v361 = vunpack.c.l.b16 %v327
    %v362 = vunpack.c.l.b16 %v328
    %v363 = vunpack.c.l.b16 %v329
    %v364 = vpack.c.b16 %v349, %v348
    %v365 = vpack.c.b16 %v351, %v350
    %v366 = vpack.c.b16 %v353, %v352
    %v367 = vpack.c.b16 %v355, %v354
    %v368 = vpack.c.b16 %v357, %v356
    %v369 = vpack.c.b16 %v359, %v358
    %v370 = vpack.c.b16 %v361, %v360
    %v371 = vpack.c.b16 %v363, %v362
    %380 = vmatpush.bf16.msra.mxu0 %v371
    %381 = vmatpush.bf16.msra.mxu0 %v370
    %382 = vmatpush.bf16.msra.mxu0 %v369
    %383 = vmatpush.bf16.msra.mxu0 %v368
    %384 = vmatpush.bf16.msra.mxu0 %v367
    %385 = vmatpush.bf16.msra.mxu0 %v366
    %386 = vmatpush.bf16.msra.mxu0 %v365
    %387 = vmatpush.bf16.msra.mxu0 %v364
    %388 = vmatmul.bf16.gmra.mxu0 %v312
    %v389 = vpop.f32.mrf.mxu0
    %v390 = vadd.f32 %v331, %v389
    %v391 = vpop.f32.mrf.mxu0
    %392 = vdwg.mxu0
    %vm393 = vcmp.gt.f32.partialorder %v390, 0.0
    %v394 = vmin.f32 %v390, 0.0
    %v395 = vmul.f32 %v394, 1.442695
    %v396 = vpow.pop %v395
    %v397 = vsub.f32 %v396, 1.0
    %v398 = vsel %vm393, %v390, %v397
    %v399 = vpack.c.bf16 %v398, %v398
    %s400 = scalar_lea.vmem [#allocation2], 256
    %v401 = vld [vmem:[%s400] sm:$0xf]
    %v402 = vld [vmem:[%s400 + $0x4] sm:$0xf]
    %v403 = vld [vmem:[%s400 + $0x8] sm:$0xf]
    %v404 = vld [vmem:[%s400 + $0xc] sm:$0xf]
    %v405 = vld [vmem:[%s400 + $0x10] sm:$0xf]
    %v406 = vld [vmem:[%s400 + $0x14] sm:$0xf]
    %v407 = vld [vmem:[%s400 + $0x18] sm:$0xf]
    %v408 = vld [vmem:[%s400 + $0x1c] sm:$0xf]
    %v409 = vld [vmem:[%s400 + $0x20] sm:$0xf]
    %v410 = vld [vmem:[%s400 + $0x24] sm:$0xf]
    %v411 = vld [vmem:[%s400 + $0x28] sm:$0xf]
    %v412 = vld [vmem:[%s400 + $0x2c] sm:$0xf]
    %v413 = vld [vmem:[%s400 + $0x30] sm:$0xf]
    %v414 = vld [vmem:[%s400 + $0x34] sm:$0xf]
    %v415 = vld [vmem:[%s400 + $0x38] sm:$0xf]
    %v416 = vld [vmem:[%s400 + $0x3c] sm:$0xf]
    %s417 = scalar_lea.vmem [#allocation4], 32
    %v418 = vld [vmem:[%s417] sm:$0xff]
    %v435 = vunpack.c.l.b16 %v401
    %v436 = vunpack.c.l.b16 %v402
    %v437 = vunpack.c.l.b16 %v403
    %v438 = vunpack.c.l.b16 %v404
    %v439 = vunpack.c.l.b16 %v405
    %v440 = vunpack.c.l.b16 %v406
    %v441 = vunpack.c.l.b16 %v407
    %v442 = vunpack.c.l.b16 %v408
    %v443 = vunpack.c.l.b16 %v409
    %v444 = vunpack.c.l.b16 %v410
    %v445 = vunpack.c.l.b16 %v411
    %v446 = vunpack.c.l.b16 %v412
    %v447 = vunpack.c.l.b16 %v413
    %v448 = vunpack.c.l.b16 %v414
    %v449 = vunpack.c.l.b16 %v415
    %v450 = vunpack.c.l.b16 %v416
    %v451 = vpack.c.b16 %v436, %v435
    %v452 = vpack.c.b16 %v438, %v437
    %v453 = vpack.c.b16 %v440, %v439
    %v454 = vpack.c.b16 %v442, %v441
    %v455 = vpack.c.b16 %v444, %v443
    %v456 = vpack.c.b16 %v446, %v445
    %v457 = vpack.c.b16 %v448, %v447
    %v458 = vpack.c.b16 %v450, %v449
    %467 = vmatpush.bf16.msra.mxu0 %v458
    %468 = vmatpush.bf16.msra.mxu0 %v457
    %469 = vmatpush.bf16.msra.mxu0 %v456
    %470 = vmatpush.bf16.msra.mxu0 %v455
    %471 = vmatpush.bf16.msra.mxu0 %v454
    %472 = vmatpush.bf16.msra.mxu0 %v453
    %473 = vmatpush.bf16.msra.mxu0 %v452
    %474 = vmatpush.bf16.msra.mxu0 %v451
    %475 = vmatmul.bf16.gmra.mxu0 %v399
    %v476 = vpop.f32.mrf.mxu0
    %v477 = vadd.f32 %v418, %v476
    %v478 = vpop.f32.mrf.mxu0
    %479 = vdwg.mxu0
    %vm480 = vcmp.gt.f32.partialorder %v477, 0.0
    %v481 = vmin.f32 %v477, 0.0
    %v482 = vmul.f32 %v481, 1.442695
    %v483 = vpow.pop %v482
    %v484 = vsub.f32 %v483, 1.0
    %v485 = vsel %vm480, %v477, %v484
    %v486 = vpack.c.bf16 %v485, %v485
    %s487 = scalar_lea.vmem [#allocation2], 320
    %v488 = vld [vmem:[%s487] sm:$0xf]
    %v489 = vld [vmem:[%s487 + $0x4] sm:$0xf]
    %v490 = vld [vmem:[%s487 + $0x8] sm:$0xf]
    %v491 = vld [vmem:[%s487 + $0xc] sm:$0xf]
    %v492 = vld [vmem:[%s487 + $0x10] sm:$0xf]
    %v493 = vld [vmem:[%s487 + $0x14] sm:$0xf]
    %v494 = vld [vmem:[%s487 + $0x18] sm:$0xf]
    %v495 = vld [vmem:[%s487 + $0x1c] sm:$0xf]
    %v496 = vld [vmem:[%s487 + $0x20] sm:$0xf]
    %v497 = vld [vmem:[%s487 + $0x24] sm:$0xf]
    %v498 = vld [vmem:[%s487 + $0x28] sm:$0xf]
    %v499 = vld [vmem:[%s487 + $0x2c] sm:$0xf]
    %v500 = vld [vmem:[%s487 + $0x30] sm:$0xf]
    %v501 = vld [vmem:[%s487 + $0x34] sm:$0xf]
    %v502 = vld [vmem:[%s487 + $0x38] sm:$0xf]
    %v503 = vld [vmem:[%s487 + $0x3c] sm:$0xf]
    %s504 = scalar_lea.vmem [#allocation4], 40
    %v505 = vld [vmem:[%s504] sm:$0xff]
    %v522 = vunpack.c.l.b16 %v488
    %v523 = vunpack.c.l.b16 %v489
    %v524 = vunpack.c.l.b16 %v490
    %v525 = vunpack.c.l.b16 %v491
    %v526 = vunpack.c.l.b16 %v492
    %v527 = vunpack.c.l.b16 %v493
    %v528 = vunpack.c.l.b16 %v494
    %v529 = vunpack.c.l.b16 %v495
    %v530 = vunpack.c.l.b16 %v496
    %v531 = vunpack.c.l.b16 %v497
    %v532 = vunpack.c.l.b16 %v498
    %v533 = vunpack.c.l.b16 %v499
    %v534 = vunpack.c.l.b16 %v500
    %v535 = vunpack.c.l.b16 %v501
    %v536 = vunpack.c.l.b16 %v502
    %v537 = vunpack.c.l.b16 %v503
    %v538 = vpack.c.b16 %v523, %v522
    %v539 = vpack.c.b16 %v525, %v524
    %v540 = vpack.c.b16 %v527, %v526
    %v541 = vpack.c.b16 %v529, %v528
    %v542 = vpack.c.b16 %v531, %v530
    %v543 = vpack.c.b16 %v533, %v532
    %v544 = vpack.c.b16 %v535, %v534
    %v545 = vpack.c.b16 %v537, %v536
    %554 = vmatpush.bf16.msra.mxu0 %v545
    %555 = vmatpush.bf16.msra.mxu0 %v544
    %556 = vmatpush.bf16.msra.mxu0 %v543
    %557 = vmatpush.bf16.msra.mxu0 %v542
    %558 = vmatpush.bf16.msra.mxu0 %v541
    %559 = vmatpush.bf16.msra.mxu0 %v540
    %560 = vmatpush.bf16.msra.mxu0 %v539
    %561 = vmatpush.bf16.msra.mxu0 %v538
    %562 = vmatmul.bf16.gmra.mxu0 %v486
    %v563 = vpop.f32.mrf.mxu0
    %v564 = vadd.f32 %v505, %v563
    %v565 = vpop.f32.mrf.mxu0
    %566 = vdwg.mxu0
    %vm567 = vcmp.gt.f32.partialorder %v564, 0.0
    %v568 = vmin.f32 %v564, 0.0
    %v569 = vmul.f32 %v568, 1.442695
    %v570 = vpow.pop %v569
    %v571 = vsub.f32 %v570, 1.0
    %v572 = vsel %vm567, %v564, %v571
    %v573 = vpack.c.bf16 %v572, %v572
    %s574 = scalar_lea.vmem [#allocation2], 384
    %v575 = vld [vmem:[%s574] sm:$0xf]
    %v576 = vld [vmem:[%s574 + $0x4] sm:$0xf]
    %v577 = vld [vmem:[%s574 + $0x8] sm:$0xf]
    %v578 = vld [vmem:[%s574 + $0xc] sm:$0xf]
    %v579 = vld [vmem:[%s574 + $0x10] sm:$0xf]
    %v580 = vld [vmem:[%s574 + $0x14] sm:$0xf]
    %v581 = vld [vmem:[%s574 + $0x18] sm:$0xf]
    %v582 = vld [vmem:[%s574 + $0x1c] sm:$0xf]
    %v583 = vld [vmem:[%s574 + $0x20] sm:$0xf]
    %v584 = vld [vmem:[%s574 + $0x24] sm:$0xf]
    %v585 = vld [vmem:[%s574 + $0x28] sm:$0xf]
    %v586 = vld [vmem:[%s574 + $0x2c] sm:$0xf]
    %v587 = vld [vmem:[%s574 + $0x30] sm:$0xf]
    %v588 = vld [vmem:[%s574 + $0x34] sm:$0xf]
    %v589 = vld [vmem:[%s574 + $0x38] sm:$0xf]
    %v590 = vld [vmem:[%s574 + $0x3c] sm:$0xf]
    %s591 = scalar_lea.vmem [#allocation4], 48
    %v592 = vld [vmem:[%s591] sm:$0xff]
    %v609 = vunpack.c.l.b16 %v575
    %v610 = vunpack.c.l.b16 %v576
    %v611 = vunpack.c.l.b16 %v577
    %v612 = vunpack.c.l.b16 %v578
    %v613 = vunpack.c.l.b16 %v579
    %v614 = vunpack.c.l.b16 %v580
    %v615 = vunpack.c.l.b16 %v581
    %v616 = vunpack.c.l.b16 %v582
    %v617 = vunpack.c.l.b16 %v583
    %v618 = vunpack.c.l.b16 %v584
    %v619 = vunpack.c.l.b16 %v585
    %v620 = vunpack.c.l.b16 %v586
    %v621 = vunpack.c.l.b16 %v587
    %v622 = vunpack.c.l.b16 %v588
    %v623 = vunpack.c.l.b16 %v589
    %v624 = vunpack.c.l.b16 %v590
    %v625 = vpack.c.b16 %v610, %v609
    %v626 = vpack.c.b16 %v612, %v611
    %v627 = vpack.c.b16 %v614, %v613
    %v628 = vpack.c.b16 %v616, %v615
    %v629 = vpack.c.b16 %v618, %v617
    %v630 = vpack.c.b16 %v620, %v619
    %v631 = vpack.c.b16 %v622, %v621
    %v632 = vpack.c.b16 %v624, %v623
    %641 = vmatpush.bf16.msra.mxu0 %v632
    %642 = vmatpush.bf16.msra.mxu0 %v631
    %643 = vmatpush.bf16.msra.mxu0 %v630
    %644 = vmatpush.bf16.msra.mxu0 %v629
    %645 = vmatpush.bf16.msra.mxu0 %v628
    %646 = vmatpush.bf16.msra.mxu0 %v627
    %647 = vmatpush.bf16.msra.mxu0 %v626
    %648 = vmatpush.bf16.msra.mxu0 %v625
    %649 = vmatmul.bf16.gmra.mxu0 %v573
    %v650 = vpop.f32.mrf.mxu0
    %v651 = vadd.f32 %v592, %v650
    %v652 = vpop.f32.mrf.mxu0
    %653 = vdwg.mxu0
    %s654 = scalar_lea.vmem [#allocation2], 448
    %v655 = vld [vmem:[%s654] sm:$0xf]
    %v656 = vld [vmem:[%s654 + $0x4] sm:$0xf]
    %v657 = vld [vmem:[%s654 + $0x8] sm:$0xf]
    %v658 = vld [vmem:[%s654 + $0xc] sm:$0xf]
    %v659 = vld [vmem:[%s654 + $0x10] sm:$0xf]
    %v660 = vld [vmem:[%s654 + $0x14] sm:$0xf]
    %v661 = vld [vmem:[%s654 + $0x18] sm:$0xf]
    %v662 = vld [vmem:[%s654 + $0x1c] sm:$0xf]
    %v663 = vld [vmem:[%s654 + $0x20] sm:$0xf]
    %v664 = vld [vmem:[%s654 + $0x24] sm:$0xf]
    %v665 = vld [vmem:[%s654 + $0x28] sm:$0xf]
    %v666 = vld [vmem:[%s654 + $0x2c] sm:$0xf]
    %v667 = vld [vmem:[%s654 + $0x30] sm:$0xf]
    %v668 = vld [vmem:[%s654 + $0x34] sm:$0xf]
    %v669 = vld [vmem:[%s654 + $0x38] sm:$0xf]
    %v670 = vld [vmem:[%s654 + $0x3c] sm:$0xf]
    %s671 = scalar_lea.vmem [#allocation4], 56
    %v672 = vld [vmem:[%s671] sm:$0xff]
    %v689 = vunpack.c.l.b16 %v655
    %v690 = vunpack.c.l.b16 %v656
    %v691 = vunpack.c.l.b16 %v657
    %v692 = vunpack.c.l.b16 %v658
    %v693 = vunpack.c.l.b16 %v659
    %v694 = vunpack.c.l.b16 %v660
    %v695 = vunpack.c.l.b16 %v661
    %v696 = vunpack.c.l.b16 %v662
    %v697 = vunpack.c.l.b16 %v663
    %v698 = vunpack.c.l.b16 %v664
    %v699 = vunpack.c.l.b16 %v665
    %v700 = vunpack.c.l.b16 %v666
    %v701 = vunpack.c.l.b16 %v667
    %v702 = vunpack.c.l.b16 %v668
    %v703 = vunpack.c.l.b16 %v669
    %v704 = vunpack.c.l.b16 %v670
    %v705 = vpack.c.b16 %v690, %v689
    %v706 = vpack.c.b16 %v692, %v691
    %v707 = vpack.c.b16 %v694, %v693
    %v708 = vpack.c.b16 %v696, %v695
    %v709 = vpack.c.b16 %v698, %v697
    %v710 = vpack.c.b16 %v700, %v699
    %v711 = vpack.c.b16 %v702, %v701
    %v712 = vpack.c.b16 %v704, %v703
    %721 = vmatpush.bf16.msra.mxu0 %v712
    %722 = vmatpush.bf16.msra.mxu0 %v711
    %723 = vmatpush.bf16.msra.mxu0 %v710
    %724 = vmatpush.bf16.msra.mxu0 %v709
    %725 = vmatpush.bf16.msra.mxu0 %v708
    %726 = vmatpush.bf16.msra.mxu0 %v707
    %727 = vmatpush.bf16.msra.mxu0 %v706
    %728 = vmatpush.bf16.msra.mxu0 %v705
    %729 = vmatmul.bf16.gmra.mxu0 %v573
    %v730 = vpop.f32.mrf.mxu0
    %v731 = vadd.f32 %v672, %v730
    %v732 = vpop.f32.mrf.mxu0
    %733 = vdwg.mxu0
    %734 = vst [vmem:[%s4] sm:$0xff] %v651
    %735 = vst [vmem:[%s5] sm:$0xff] %v731
    %v736 = vld [vmem:[%s1] sm:$0xff]
    %v737 = vmul.f32 %v731, 0.5
    %v738 = vmul.f32 %v737, 1.442695
    %v739 = vpow.pop %v738
    %v740 = vmul.f32 %v736, %v739
    %v741 = vadd.f32 %v740, %v651
    %v742 = vpack.c.bf16 %v741, %v741
    %s743 = scalar_lea.vmem [#allocation2], 512
    %v744 = vld [vmem:[%s743] sm:$0xf]
    %v745 = vld [vmem:[%s743 + $0x4] sm:$0xf]
    %v746 = vld [vmem:[%s743 + $0x8] sm:$0xf]
    %v747 = vld [vmem:[%s743 + $0xc] sm:$0xf]
    %v748 = vld [vmem:[%s743 + $0x10] sm:$0xf]
    %v749 = vld [vmem:[%s743 + $0x14] sm:$0xf]
    %v750 = vld [vmem:[%s743 + $0x18] sm:$0xf]
    %v751 = vld [vmem:[%s743 + $0x1c] sm:$0xf]
    %v752 = vld [vmem:[%s743 + $0x20] sm:$0xf]
    %v753 = vld [vmem:[%s743 + $0x24] sm:$0xf]
    %v754 = vld [vmem:[%s743 + $0x28] sm:$0xf]
    %v755 = vld [vmem:[%s743 + $0x2c] sm:$0xf]
    %v756 = vld [vmem:[%s743 + $0x30] sm:$0xf]
    %v757 = vld [vmem:[%s743 + $0x34] sm:$0xf]
    %v758 = vld [vmem:[%s743 + $0x38] sm:$0xf]
    %v759 = vld [vmem:[%s743 + $0x3c] sm:$0xf]
    %s760 = scalar_lea.vmem [#allocation4], 64
    %v761 = vld [vmem:[%s760] sm:$0xff]
    %v778 = vunpack.c.l.b16 %v744
    %v779 = vunpack.c.l.b16 %v745
    %v780 = vunpack.c.l.b16 %v746
    %v781 = vunpack.c.l.b16 %v747
    %v782 = vunpack.c.l.b16 %v748
    %v783 = vunpack.c.l.b16 %v749
    %v784 = vunpack.c.l.b16 %v750
    %v785 = vunpack.c.l.b16 %v751
    %v786 = vunpack.c.l.b16 %v752
    %v787 = vunpack.c.l.b16 %v753
    %v788 = vunpack.c.l.b16 %v754
    %v789 = vunpack.c.l.b16 %v755
    %v790 = vunpack.c.l.b16 %v756
    %v791 = vunpack.c.l.b16 %v757
    %v792 = vunpack.c.l.b16 %v758
    %v793 = vunpack.c.l.b16 %v759
    %v794 = vpack.c.b16 %v779, %v778
    %v795 = vpack.c.b16 %v781, %v780
    %v796 = vpack.c.b16 %v783, %v782
    %v797 = vpack.c.b16 %v785, %v784
    %v798 = vpack.c.b16 %v787, %v786
    %v799 = vpack.c.b16 %v789, %v788
    %v800 = vpack.c.b16 %v791, %v790
    %v801 = vpack.c.b16 %v793, %v792
    %810 = vmatpush.bf16.msra.mxu0 %v801
    %811 = vmatpush.bf16.msra.mxu0 %v800
    %812 = vmatpush.bf16.msra.mxu0 %v799
    %813 = vmatpush.bf16.msra.mxu0 %v798
    %814 = vmatpush.bf16.msra.mxu0 %v797
    %815 = vmatpush.bf16.msra.mxu0 %v796
    %816 = vmatpush.bf16.msra.mxu0 %v795
    %817 = vmatpush.bf16.msra.mxu0 %v794
    %818 = vmatmul.bf16.gmra.mxu0 %v742
    %v819 = vpop.f32.mrf.mxu0
    %v820 = vadd.f32 %v761, %v819
    %v821 = vpop.f32.mrf.mxu0
    %822 = vdwg.mxu0
    %vm823 = vcmp.gt.f32.partialorder %v820, 0.0
    %v824 = vmin.f32 %v820, 0.0
    %v825 = vmul.f32 %v824, 1.442695
    %v826 = vpow.pop %v825
    %v827 = vsub.f32 %v826, 1.0
    %v828 = vsel %vm823, %v820, %v827
    %v829 = vpack.c.bf16 %v828, %v828
    %s830 = scalar_lea.vmem [#allocation2], 576
    %v831 = vld [vmem:[%s830] sm:$0xf]
    %v832 = vld [vmem:[%s830 + $0x4] sm:$0xf]
    %v833 = vld [vmem:[%s830 + $0x8] sm:$0xf]
    %v834 = vld [vmem:[%s830 + $0xc] sm:$0xf]
    %v835 = vld [vmem:[%s830 + $0x10] sm:$0xf]
    %v836 = vld [vmem:[%s830 + $0x14] sm:$0xf]
    %v837 = vld [vmem:[%s830 + $0x18] sm:$0xf]
    %v838 = vld [vmem:[%s830 + $0x1c] sm:$0xf]
    %v839 = vld [vmem:[%s830 + $0x20] sm:$0xf]
    %v840 = vld [vmem:[%s830 + $0x24] sm:$0xf]
    %v841 = vld [vmem:[%s830 + $0x28] sm:$0xf]
    %v842 = vld [vmem:[%s830 + $0x2c] sm:$0xf]
    %v843 = vld [vmem:[%s830 + $0x30] sm:$0xf]
    %v844 = vld [vmem:[%s830 + $0x34] sm:$0xf]
    %v845 = vld [vmem:[%s830 + $0x38] sm:$0xf]
    %v846 = vld [vmem:[%s830 + $0x3c] sm:$0xf]
    %s847 = scalar_lea.vmem [#allocation4], 72
    %v848 = vld [vmem:[%s847] sm:$0xff]
    %v865 = vunpack.c.l.b16 %v831
    %v866 = vunpack.c.l.b16 %v832
    %v867 = vunpack.c.l.b16 %v833
    %v868 = vunpack.c.l.b16 %v834
    %v869 = vunpack.c.l.b16 %v835
    %v870 = vunpack.c.l.b16 %v836
    %v871 = vunpack.c.l.b16 %v837
    %v872 = vunpack.c.l.b16 %v838
    %v873 = vunpack.c.l.b16 %v839
    %v874 = vunpack.c.l.b16 %v840
    %v875 = vunpack.c.l.b16 %v841
    %v876 = vunpack.c.l.b16 %v842
    %v877 = vunpack.c.l.b16 %v843
    %v878 = vunpack.c.l.b16 %v844
    %v879 = vunpack.c.l.b16 %v845
    %v880 = vunpack.c.l.b16 %v846
    %v881 = vpack.c.b16 %v866, %v865
    %v882 = vpack.c.b16 %v868, %v867
    %v883 = vpack.c.b16 %v870, %v869
    %v884 = vpack.c.b16 %v872, %v871
    %v885 = vpack.c.b16 %v874, %v873
    %v886 = vpack.c.b16 %v876, %v875
    %v887 = vpack.c.b16 %v878, %v877
    %v888 = vpack.c.b16 %v880, %v879
    %897 = vmatpush.bf16.msra.mxu0 %v888
    %898 = vmatpush.bf16.msra.mxu0 %v887
    %899 = vmatpush.bf16.msra.mxu0 %v886
    %900 = vmatpush.bf16.msra.mxu0 %v885
    %901 = vmatpush.bf16.msra.mxu0 %v884
    %902 = vmatpush.bf16.msra.mxu0 %v883
    %903 = vmatpush.bf16.msra.mxu0 %v882
    %904 = vmatpush.bf16.msra.mxu0 %v881
    %905 = vmatmul.bf16.gmra.mxu0 %v829
    %v906 = vpop.f32.mrf.mxu0
    %v907 = vadd.f32 %v848, %v906
    %v908 = vpop.f32.mrf.mxu0
    %909 = vdwg.mxu0
    %vm910 = vcmp.gt.f32.partialorder %v907, 0.0
    %v911 = vmin.f32 %v907, 0.0
    %v912 = vmul.f32 %v911, 1.442695
    %v913 = vpow.pop %v912
    %v914 = vsub.f32 %v913, 1.0
    %v915 = vsel %vm910, %v907, %v914
    %v916 = vpack.c.bf16 %v915, %v915
    %s917 = scalar_lea.vmem [#allocation2], 640
    %v918 = vld [vmem:[%s917] sm:$0xf]
    %v919 = vld [vmem:[%s917 + $0x4] sm:$0xf]
    %v920 = vld [vmem:[%s917 + $0x8] sm:$0xf]
    %v921 = vld [vmem:[%s917 + $0xc] sm:$0xf]
    %v922 = vld [vmem:[%s917 + $0x10] sm:$0xf]
    %v923 = vld [vmem:[%s917 + $0x14] sm:$0xf]
    %v924 = vld [vmem:[%s917 + $0x18] sm:$0xf]
    %v925 = vld [vmem:[%s917 + $0x1c] sm:$0xf]
    %v926 = vld [vmem:[%s917 + $0x20] sm:$0xf]
    %v927 = vld [vmem:[%s917 + $0x24] sm:$0xf]
    %v928 = vld [vmem:[%s917 + $0x28] sm:$0xf]
    %v929 = vld [vmem:[%s917 + $0x2c] sm:$0xf]
    %v930 = vld [vmem:[%s917 + $0x30] sm:$0xf]
    %v931 = vld [vmem:[%s917 + $0x34] sm:$0xf]
    %v932 = vld [vmem:[%s917 + $0x38] sm:$0xf]
    %v933 = vld [vmem:[%s917 + $0x3c] sm:$0xf]
    %s934 = scalar_lea.vmem [#allocation4], 80
    %v935 = vld [vmem:[%s934] sm:$0xff]
    %v952 = vunpack.c.l.b16 %v918
    %v953 = vunpack.c.l.b16 %v919
    %v954 = vunpack.c.l.b16 %v920
    %v955 = vunpack.c.l.b16 %v921
    %v956 = vunpack.c.l.b16 %v922
    %v957 = vunpack.c.l.b16 %v923
    %v958 = vunpack.c.l.b16 %v924
    %v959 = vunpack.c.l.b16 %v925
    %v960 = vunpack.c.l.b16 %v926
    %v961 = vunpack.c.l.b16 %v927
    %v962 = vunpack.c.l.b16 %v928
    %v963 = vunpack.c.l.b16 %v929
    %v964 = vunpack.c.l.b16 %v930
    %v965 = vunpack.c.l.b16 %v931
    %v966 = vunpack.c.l.b16 %v932
    %v967 = vunpack.c.l.b16 %v933
    %v968 = vpack.c.b16 %v953, %v952
    %v969 = vpack.c.b16 %v955, %v954
    %v970 = vpack.c.b16 %v957, %v956
    %v971 = vpack.c.b16 %v959, %v958
    %v972 = vpack.c.b16 %v961, %v960
    %v973 = vpack.c.b16 %v963, %v962
    %v974 = vpack.c.b16 %v965, %v964
    %v975 = vpack.c.b16 %v967, %v966
    %984 = vmatpush.bf16.msra.mxu0 %v975
    %985 = vmatpush.bf16.msra.mxu0 %v974
    %986 = vmatpush.bf16.msra.mxu0 %v973
    %987 = vmatpush.bf16.msra.mxu0 %v972
    %988 = vmatpush.bf16.msra.mxu0 %v971
    %989 = vmatpush.bf16.msra.mxu0 %v970
    %990 = vmatpush.bf16.msra.mxu0 %v969
    %991 = vmatpush.bf16.msra.mxu0 %v968
    %992 = vmatmul.bf16.gmra.mxu0 %v916
    %v993 = vpop.f32.mrf.mxu0
    %v994 = vadd.f32 %v935, %v993
    %v995 = vpop.f32.mrf.mxu0
    %996 = vdwg.mxu0
    %vm997 = vcmp.gt.f32.partialorder %v994, 0.0
    %v998 = vmin.f32 %v994, 0.0
    %v999 = vmul.f32 %v998, 1.442695
    %v1000 = vpow.pop %v999
    %v1001 = vsub.f32 %v1000, 1.0
    %v1002 = vsel %vm997, %v994, %v1001
    %v1003 = vpack.c.bf16 %v1002, %v1002
    %s1004 = scalar_lea.vmem [#allocation2], 704
    %v1005 = vld [vmem:[%s1004] sm:$0xf]
    %v1006 = vld [vmem:[%s1004 + $0x4] sm:$0xf]
    %v1007 = vld [vmem:[%s1004 + $0x8] sm:$0xf]
    %v1008 = vld [vmem:[%s1004 + $0xc] sm:$0xf]
    %v1009 = vld [vmem:[%s1004 + $0x10] sm:$0xf]
    %v1010 = vld [vmem:[%s1004 + $0x14] sm:$0xf]
    %v1011 = vld [vmem:[%s1004 + $0x18] sm:$0xf]
    %v1012 = vld [vmem:[%s1004 + $0x1c] sm:$0xf]
    %v1013 = vld [vmem:[%s1004 + $0x20] sm:$0xf]
    %v1014 = vld [vmem:[%s1004 + $0x24] sm:$0xf]
    %v1015 = vld [vmem:[%s1004 + $0x28] sm:$0xf]
    %v1016 = vld [vmem:[%s1004 + $0x2c] sm:$0xf]
    %v1017 = vld [vmem:[%s1004 + $0x30] sm:$0xf]
    %v1018 = vld [vmem:[%s1004 + $0x34] sm:$0xf]
    %v1019 = vld [vmem:[%s1004 + $0x38] sm:$0xf]
    %v1020 = vld [vmem:[%s1004 + $0x3c] sm:$0xf]
    %s1021 = scalar_lea.vmem [#allocation4], 88
    %v1022 = vld [vmem:[%s1021] sm:$0xff]
    %v1039 = vunpack.c.l.b16 %v1005
    %v1040 = vunpack.c.l.b16 %v1006
    %v1041 = vunpack.c.l.b16 %v1007
    %v1042 = vunpack.c.l.b16 %v1008
    %v1043 = vunpack.c.l.b16 %v1009
    %v1044 = vunpack.c.l.b16 %v1010
    %v1045 = vunpack.c.l.b16 %v1011
    %v1046 = vunpack.c.l.b16 %v1012
    %v1047 = vunpack.c.l.b16 %v1013
    %v1048 = vunpack.c.l.b16 %v1014
    %v1049 = vunpack.c.l.b16 %v1015
    %v1050 = vunpack.c.l.b16 %v1016
    %v1051 = vunpack.c.l.b16 %v1017
    %v1052 = vunpack.c.l.b16 %v1018
    %v1053 = vunpack.c.l.b16 %v1019
    %v1054 = vunpack.c.l.b16 %v1020
    %v1055 = vpack.c.b16 %v1040, %v1039
    %v1056 = vpack.c.b16 %v1042, %v1041
    %v1057 = vpack.c.b16 %v1044, %v1043
    %v1058 = vpack.c.b16 %v1046, %v1045
    %v1059 = vpack.c.b16 %v1048, %v1047
    %v1060 = vpack.c.b16 %v1050, %v1049
    %v1061 = vpack.c.b16 %v1052, %v1051
    %v1062 = vpack.c.b16 %v1054, %v1053
    %1071 = vmatpush.bf16.msra.mxu0 %v1062
    %1072 = vmatpush.bf16.msra.mxu0 %v1061
    %1073 = vmatpush.bf16.msra.mxu0 %v1060
    %1074 = vmatpush.bf16.msra.mxu0 %v1059
    %1075 = vmatpush.bf16.msra.mxu0 %v1058
    %1076 = vmatpush.bf16.msra.mxu0 %v1057
    %1077 = vmatpush.bf16.msra.mxu0 %v1056
    %1078 = vmatpush.bf16.msra.mxu0 %v1055
    %1079 = vmatmul.bf16.gmra.mxu0 %v1003
    %v1080 = vpop.f32.mrf.mxu0
    %v1081 = vadd.f32 %v1022, %v1080
    %v1082 = vpop.f32.mrf.mxu0
    %1083 = vdwg.mxu0
    %vm1084 = vcmp.gt.f32.partialorder %v1081, 0.0
    %v1085 = vmin.f32 %v1081, 0.0
    %v1086 = vmul.f32 %v1085, 1.442695
    %v1087 = vpow.pop %v1086
    %v1088 = vsub.f32 %v1087, 1.0
    %v1089 = vsel %vm1084, %v1081, %v1088
    %v1090 = vpack.c.bf16 %v1089, %v1089
    %s1091 = scalar_lea.vmem [#allocation2], 768
    %v1092 = vld [vmem:[%s1091] sm:$0xf]
    %v1093 = vld [vmem:[%s1091 + $0x4] sm:$0xf]
    %v1094 = vld [vmem:[%s1091 + $0x8] sm:$0xf]
    %v1095 = vld [vmem:[%s1091 + $0xc] sm:$0xf]
    %v1096 = vld [vmem:[%s1091 + $0x10] sm:$0xf]
    %v1097 = vld [vmem:[%s1091 + $0x14] sm:$0xf]
    %v1098 = vld [vmem:[%s1091 + $0x18] sm:$0xf]
    %v1099 = vld [vmem:[%s1091 + $0x1c] sm:$0xf]
    %v1100 = vld [vmem:[%s1091 + $0x20] sm:$0xf]
    %v1101 = vld [vmem:[%s1091 + $0x24] sm:$0xf]
    %v1102 = vld [vmem:[%s1091 + $0x28] sm:$0xf]
    %v1103 = vld [vmem:[%s1091 + $0x2c] sm:$0xf]
    %v1104 = vld [vmem:[%s1091 + $0x30] sm:$0xf]
    %v1105 = vld [vmem:[%s1091 + $0x34] sm:$0xf]
    %v1106 = vld [vmem:[%s1091 + $0x38] sm:$0xf]
    %v1107 = vld [vmem:[%s1091 + $0x3c] sm:$0xf]
    %s1108 = scalar_lea.vmem [#allocation4], 96
    %v1109 = vld [vmem:[%s1108] sm:$0xff]
    %v1126 = vunpack.c.l.b16 %v1092
    %v1127 = vunpack.c.l.b16 %v1093
    %v1128 = vunpack.c.l.b16 %v1094
    %v1129 = vunpack.c.l.b16 %v1095
    %v1130 = vunpack.c.l.b16 %v1096
    %v1131 = vunpack.c.l.b16 %v1097
    %v1132 = vunpack.c.l.b16 %v1098
    %v1133 = vunpack.c.l.b16 %v1099
    %v1134 = vunpack.c.l.b16 %v1100
    %v1135 = vunpack.c.l.b16 %v1101
    %v1136 = vunpack.c.l.b16 %v1102
    %v1137 = vunpack.c.l.b16 %v1103
    %v1138 = vunpack.c.l.b16 %v1104
    %v1139 = vunpack.c.l.b16 %v1105
    %v1140 = vunpack.c.l.b16 %v1106
    %v1141 = vunpack.c.l.b16 %v1107
    %v1142 = vpack.c.b16 %v1127, %v1126
    %v1143 = vpack.c.b16 %v1129, %v1128
    %v1144 = vpack.c.b16 %v1131, %v1130
    %v1145 = vpack.c.b16 %v1133, %v1132
    %v1146 = vpack.c.b16 %v1135, %v1134
    %v1147 = vpack.c.b16 %v1137, %v1136
    %v1148 = vpack.c.b16 %v1139, %v1138
    %v1149 = vpack.c.b16 %v1141, %v1140
    %1158 = vmatpush.bf16.msra.mxu0 %v1149
    %1159 = vmatpush.bf16.msra.mxu0 %v1148
    %1160 = vmatpush.bf16.msra.mxu0 %v1147
    %1161 = vmatpush.bf16.msra.mxu0 %v1146
    %1162 = vmatpush.bf16.msra.mxu0 %v1145
    %1163 = vmatpush.bf16.msra.mxu0 %v1144
    %1164 = vmatpush.bf16.msra.mxu0 %v1143
    %1165 = vmatpush.bf16.msra.mxu0 %v1142
    %1166 = vmatmul.bf16.gmra.mxu0 %v1090
    %v1167 = vpop.f32.mrf.mxu0
    %v1168 = vadd.f32 %v1109, %v1167
    %v1169 = vpop.f32.mrf.mxu0
    %1170 = vdwg.mxu0
    %vm1171 = vcmp.gt.f32.partialorder %v1168, 0.0
    %v1172 = vmin.f32 %v1168, 0.0
    %v1173 = vmul.f32 %v1172, 1.442695
    %v1174 = vpow.pop %v1173
    %v1175 = vsub.f32 %v1174, 1.0
    %v1176 = vsel %vm1171, %v1168, %v1175
    %v1177 = vpack.c.bf16 %v1176, %v1176
    %s1178 = scalar_lea.vmem [#allocation2], 832
    %v1179 = vld [vmem:[%s1178] sm:$0xf]
    %v1180 = vld [vmem:[%s1178 + $0x4] sm:$0xf]
    %v1181 = vld [vmem:[%s1178 + $0x8] sm:$0xf]
    %v1182 = vld [vmem:[%s1178 + $0xc] sm:$0xf]
    %v1183 = vld [vmem:[%s1178 + $0x10] sm:$0xf]
    %v1184 = vld [vmem:[%s1178 + $0x14] sm:$0xf]
    %v1185 = vld [vmem:[%s1178 + $0x18] sm:$0xf]
    %v1186 = vld [vmem:[%s1178 + $0x1c] sm:$0xf]
    %v1187 = vld [vmem:[%s1178 + $0x20] sm:$0xf]
    %v1188 = vld [vmem:[%s1178 + $0x24] sm:$0xf]
    %v1189 = vld [vmem:[%s1178 + $0x28] sm:$0xf]
    %v1190 = vld [vmem:[%s1178 + $0x2c] sm:$0xf]
    %v1191 = vld [vmem:[%s1178 + $0x30] sm:$0xf]
    %v1192 = vld [vmem:[%s1178 + $0x34] sm:$0xf]
    %v1193 = vld [vmem:[%s1178 + $0x38] sm:$0xf]
    %v1194 = vld [vmem:[%s1178 + $0x3c] sm:$0xf]
    %s1195 = scalar_lea.vmem [#allocation4], 104
    %v1196 = vld [vmem:[%s1195] sm:$0xff]
    %v1213 = vunpack.c.l.b16 %v1179
    %v1214 = vunpack.c.l.b16 %v1180
    %v1215 = vunpack.c.l.b16 %v1181
    %v1216 = vunpack.c.l.b16 %v1182
    %v1217 = vunpack.c.l.b16 %v1183
    %v1218 = vunpack.c.l.b16 %v1184
    %v1219 = vunpack.c.l.b16 %v1185
    %v1220 = vunpack.c.l.b16 %v1186
    %v1221 = vunpack.c.l.b16 %v1187
    %v1222 = vunpack.c.l.b16 %v1188
    %v1223 = vunpack.c.l.b16 %v1189
    %v1224 = vunpack.c.l.b16 %v1190
    %v1225 = vunpack.c.l.b16 %v1191
    %v1226 = vunpack.c.l.b16 %v1192
    %v1227 = vunpack.c.l.b16 %v1193
    %v1228 = vunpack.c.l.b16 %v1194
    %v1229 = vpack.c.b16 %v1214, %v1213
    %v1230 = vpack.c.b16 %v1216, %v1215
    %v1231 = vpack.c.b16 %v1218, %v1217
    %v1232 = vpack.c.b16 %v1220, %v1219
    %v1233 = vpack.c.b16 %v1222, %v1221
    %v1234 = vpack.c.b16 %v1224, %v1223
    %v1235 = vpack.c.b16 %v1226, %v1225
    %v1236 = vpack.c.b16 %v1228, %v1227
    %1245 = vmatpush.bf16.msra.mxu0 %v1236
    %1246 = vmatpush.bf16.msra.mxu0 %v1235
    %1247 = vmatpush.bf16.msra.mxu0 %v1234
    %1248 = vmatpush.bf16.msra.mxu0 %v1233
    %1249 = vmatpush.bf16.msra.mxu0 %v1232
    %1250 = vmatpush.bf16.msra.mxu0 %v1231
    %1251 = vmatpush.bf16.msra.mxu0 %v1230
    %1252 = vmatpush.bf16.msra.mxu0 %v1229
    %1253 = vmatmul.bf16.gmra.mxu0 %v1177
    %v1254 = vpop.f32.mrf.mxu0
    %v1255 = vadd.f32 %v1196, %v1254
    %v1256 = vpop.f32.mrf.mxu0
    %1257 = vdwg.mxu0
    %vm1258 = vcmp.gt.f32.partialorder %v1255, 0.0
    %v1259 = vmin.f32 %v1255, 0.0
    %v1260 = vmul.f32 %v1259, 1.442695
    %v1261 = vpow.pop %v1260
    %v1262 = vsub.f32 %v1261, 1.0
    %v1263 = vsel %vm1258, %v1255, %v1262
    %v1264 = vpack.c.bf16 %v1263, %v1263
    %s1265 = scalar_lea.vmem [#allocation2], 896
    %v1266 = vld [vmem:[%s1265] sm:$0xf]
    %v1267 = vld [vmem:[%s1265 + $0x4] sm:$0xf]
    %v1268 = vld [vmem:[%s1265 + $0x8] sm:$0xf]
    %v1269 = vld [vmem:[%s1265 + $0xc] sm:$0xf]
    %v1270 = vld [vmem:[%s1265 + $0x10] sm:$0xf]
    %v1271 = vld [vmem:[%s1265 + $0x14] sm:$0xf]
    %v1272 = vld [vmem:[%s1265 + $0x18] sm:$0xf]
    %v1273 = vld [vmem:[%s1265 + $0x1c] sm:$0xf]
    %v1274 = vld [vmem:[%s1265 + $0x20] sm:$0xf]
    %v1275 = vld [vmem:[%s1265 + $0x24] sm:$0xf]
    %v1276 = vld [vmem:[%s1265 + $0x28] sm:$0xf]
    %v1277 = vld [vmem:[%s1265 + $0x2c] sm:$0xf]
    %v1278 = vld [vmem:[%s1265 + $0x30] sm:$0xf]
    %v1279 = vld [vmem:[%s1265 + $0x34] sm:$0xf]
    %v1280 = vld [vmem:[%s1265 + $0x38] sm:$0xf]
    %v1281 = vld [vmem:[%s1265 + $0x3c] sm:$0xf]
    %s1282 = scalar_lea.vmem [#allocation4], 112
    %v1283 = vld [vmem:[%s1282] sm:$0xff]
    %v1300 = vunpack.c.l.b16 %v1266
    %v1301 = vunpack.c.l.b16 %v1267
    %v1302 = vunpack.c.l.b16 %v1268
    %v1303 = vunpack.c.l.b16 %v1269
    %v1304 = vunpack.c.l.b16 %v1270
    %v1305 = vunpack.c.l.b16 %v1271
    %v1306 = vunpack.c.l.b16 %v1272
    %v1307 = vunpack.c.l.b16 %v1273
    %v1308 = vunpack.c.l.b16 %v1274
    %v1309 = vunpack.c.l.b16 %v1275
    %v1310 = vunpack.c.l.b16 %v1276
    %v1311 = vunpack.c.l.b16 %v1277
    %v1312 = vunpack.c.l.b16 %v1278
    %v1313 = vunpack.c.l.b16 %v1279
    %v1314 = vunpack.c.l.b16 %v1280
    %v1315 = vunpack.c.l.b16 %v1281
    %v1316 = vpack.c.b16 %v1301, %v1300
    %v1317 = vpack.c.b16 %v1303, %v1302
    %v1318 = vpack.c.b16 %v1305, %v1304
    %v1319 = vpack.c.b16 %v1307, %v1306
    %v1320 = vpack.c.b16 %v1309, %v1308
    %v1321 = vpack.c.b16 %v1311, %v1310
    %v1322 = vpack.c.b16 %v1313, %v1312
    %v1323 = vpack.c.b16 %v1315, %v1314
    %1332 = vmatpush.bf16.msra.mxu0 %v1323
    %1333 = vmatpush.bf16.msra.mxu0 %v1322
    %1334 = vmatpush.bf16.msra.mxu0 %v1321
    %1335 = vmatpush.bf16.msra.mxu0 %v1320
    %1336 = vmatpush.bf16.msra.mxu0 %v1319
    %1337 = vmatpush.bf16.msra.mxu0 %v1318
    %1338 = vmatpush.bf16.msra.mxu0 %v1317
    %1339 = vmatpush.bf16.msra.mxu0 %v1316
    %1340 = vmatmul.bf16.gmra.mxu0 %v1264
    %v1341 = vpop.f32.mrf.mxu0
    %v1342 = vadd.f32 %v1283, %v1341
    %v1343 = vpop.f32.mrf.mxu0
    %1344 = vdwg.mxu0
    %vm1345 = vcmp.gt.f32.partialorder %v1342, 0.0
    %v1346 = vmin.f32 %v1342, 0.0
    %v1347 = vmul.f32 %v1346, 1.442695
    %v1348 = vpow.pop %v1347
    %v1349 = vsub.f32 %v1348, 1.0
    %v1350 = vsel %vm1345, %v1342, %v1349
    %1351 = vst [vmem:[%s6] sm:$0xff] %v1350
    // Predicated region
    $region26: #{graph_vae_forward.1} parent=1 // pred_check
      _
    $region27: #{graph_vae_forward.1} parent=1 // pred_check_branch
      %1353 = sbr.rel (0) target = $region29
    $region28: #{graph_vae_forward.1} parent=1 // pred_region
      _
    $region29: #{graph_vae_forward.1} parent=1 // pred_fallthru
      _
    // Predicated region
    $region30: #{graph_vae_forward.1} parent=1 // pred_check
      _
    $region31: #{graph_vae_forward.1} parent=1 // pred_check_branch
      %1355 = sbr.rel (0) target = $region33
    $region32: #{graph_vae_forward.1} parent=1 // pred_region
      _
    $region33: #{graph_vae_forward.1} parent=1 // pred_fallthru
      _
    // Predicated region
    $region34: #{graph_vae_forward.1} parent=1 // pred_check
      _
    $region35: #{graph_vae_forward.1} parent=1 // pred_check_branch
      %1357 = sbr.rel (0) target = $region37
    $region36: #{graph_vae_forward.1} parent=1 // pred_region
      _
    $region37: #{graph_vae_forward.1} parent=1 // pred_fallthru
      _
    // Predicated region
    $region38: #{graph_vae_forward.1} parent=1 // pred_check
      _
    $region39: #{graph_vae_forward.1} parent=1 // pred_check_branch
      %1359 = sbr.rel (0) target = $region41
    $region40: #{graph_vae_forward.1} parent=1 // pred_region
      _
    $region41: #{graph_vae_forward.1} parent=1 // pred_fallthru
      _
    // Predicated region
    $region42: #{graph_vae_forward.1} parent=1 // pred_check
      _
    $region43: #{graph_vae_forward.1} parent=1 // pred_check_branch
      %1361 = sbr.rel (0) target = $region45
    $region44: #{graph_vae_forward.1} parent=1 // pred_region
      _
    $region45: #{graph_vae_forward.1} parent=1 // pred_fallthru
      _
    // Predicated region
    $region46: #{graph_vae_forward.1} parent=1 // pred_check
      _
    $region47: #{graph_vae_forward.1} parent=1 // pred_check_branch
      %1363 = sbr.rel (0) target = $region49
    $region48: #{graph_vae_forward.1} parent=1 // pred_region
      _
    $region49: #{graph_vae_forward.1} parent=1 // pred_fallthru
      _
    %1364 = vsyncpa [#allocation3], 1
    %1365 = vsyncpa [#allocation5], 1

</llo_original>
